<compile_context>
chip_gen: v5e
topology: v5e:2x2
jax: 0.10.0
libtpu: 0.0.40
codegen_flags: <defaults>
</compile_context>

<pallas_src>
import functools

import jax
import jax.numpy as jnp
from jax.experimental import pallas as pl
from jax.experimental.pallas import tpu as pltpu


# ----------------------------- fused Pallas kernel --------------------------
def _fused_lstm_kernel(*refs, num_layers, hidden_unit, num_seq_scratch, unroll):
    """All stacked LSTM layers (PyTorch gate order i,f,g,o) + Tanh, fused.

    Ref layout:
      refs[0]                    : x       (T, Nb, D) bf16 time-major input block
      refs[1+3l : 4+3l]          : wih_l (Din,4H) bf16, whh_l (H,4H) bf16,
                                   b_l (1,4H) f32   (i/f/o columns pre-scaled by 0.5)
      refs[1+3L]                 : out     (Nb, H) f32   tanh(h_T) of last layer
      refs[2+3L : 2+3L+n_scr]    : bf16 VMEM inter-layer sequence buffers (T, Nb, H)
      refs[2+3L+n_scr]           : bf16 VMEM pre-gemm buffer xg (T, Nb, 4H)
    """
    H = hidden_unit
    L = num_layers
    x_ref = refs[0]
    w_refs = refs[1:1 + 3 * L]
    out_ref = refs[1 + 3 * L]
    scr_refs = refs[2 + 3 * L: 2 + 3 * L + num_seq_scratch]
    xg_ref = refs[2 + 3 * L + num_seq_scratch]

    T, Nb, _ = x_ref.shape

    # Lane mask: the "g" gate lanes [2H, 3H) keep tanh; i/f/o lanes (whose
    # weights/bias were pre-scaled by 0.5 in the wrapper) become sigmoid via
    # sigmoid(x) = 0.5 * (1 + tanh(x/2))  -> one full-width EUP pass per step.
    lane = jax.lax.broadcasted_iota(jnp.int32, (Nb, 4 * H), 1)
    tanh_lane = (lane >= 2 * H) & (lane < 3 * H)

    in_ref = x_ref
    for layer in range(L):
        wih = w_refs[3 * layer][...]          # (Din, 4H) bf16
        whh = w_refs[3 * layer + 1][...]      # (H, 4H)   bf16
        b = w_refs[3 * layer + 2][...]        # (1, 4H)   f32
        is_last = layer == L - 1
        out_scr = None if is_last else scr_refs[layer % len(scr_refs)]

        # ---- Phase 1: cuDNN-style pre-gemm.  All T input projections are
        # independent, so the MXU pipelines them; results land in a bf16 VMEM
        # scratch ref so they never inflate vreg live ranges of the recurrence.
        def pre_gemm(t, carry, in_ref=in_ref, wih=wih, b=b):
            xg = jnp.dot(in_ref[t], wih, preferred_element_type=jnp.float32) + b
            xg_ref[t] = xg.astype(xg_ref.dtype)
            return carry

        jax.lax.fori_loop(0, T, pre_gemm, 0, unroll=unroll)

        # ---- Phase 2: serial recurrence; only h @ W_hh on the critical path.
        def step(t, carry, whh=whh, out_scr=out_scr, is_last=is_last):
            h, c = carry                                           # f32 state
            gates = (jnp.dot(h.astype(whh.dtype), whh,
                             preferred_element_type=jnp.float32)
                     + xg_ref[t].astype(jnp.float32))              # (Nb, 4H) f32
            t_act = jnp.tanh(gates)                 # single full-width EUP pass
            act = jnp.where(tanh_lane, t_act, 0.5 * (t_act + 1.0))
            i = act[:, 0 * H:1 * H]
            f = act[:, 1 * H:2 * H]
            g = act[:, 2 * H:3 * H]
            o = act[:, 3 * H:4 * H]
            c_new = f * c + i * g
            h_new = o * jnp.tanh(c_new)
            if not is_last:
                # nn.Tanh() between layers; stays in VMEM (bf16).
                out_scr[t] = jnp.tanh(h_new).astype(out_scr.dtype)
            return h_new, c_new

        h0 = jnp.zeros((Nb, H), jnp.float32)
        c0 = jnp.zeros((Nb, H), jnp.float32)
        h_T, _ = jax.lax.fori_loop(0, T, step, (h0, c0), unroll=unroll)

        if is_last:
            # Only the final last-timestep tile ever leaves VMEM.
            out_ref[...] = jnp.tanh(h_T).astype(out_ref.dtype)
        else:
            in_ref = out_scr


# ------------------------------ tiling helpers --------------------------------
def _pick_block_n(N, T, D, H, n_scr, budget_bytes=24 * 1024 * 1024, max_bn=512):
    """Largest block_n (divisor of N, multiple of 8) under a per-block VMEM
    budget, preferring >= 2 grid steps so v7x's two TensorCores both work."""
    def block_bytes(bn):
        return (2 * T * bn * D * 2            # double-buffered bf16 input
                + n_scr * T * bn * H * 2      # inter-layer bf16 seq scratch
                + T * bn * 4 * H * 2          # bf16 pre-gemm scratch
                + 2 * bn * H * 4)             # double-buffered f32 output

    if N % 8 != 0:
        return N                              # tiny / odd N: one full block
    cands = [bn for bn in range(8, min(N, max_bn) + 1, 8)
             if N % bn == 0 and block_bytes(bn) <= budget_bytes]
    if not cands:
        return 8
    if N >= 16:
        multi = [bn for bn in cands if N // bn >= 2]
        if multi:
            return max(multi)
    return max(cands)


def _vmem_limit_bytes():
    cap = 64 * 1024 * 1024
    try:
        cap = int(pltpu.get_tpu_info().vmem_capacity_bytes)
    except Exception:
        pass
    # ~48 MiB on v7x (64 MiB physical), 96 MiB on v5e/v6e (128 MiB physical).
    return int(min(cap * 3 // 4, 96 * 1024 * 1024))


def fused_lstm_pallas(x_tm, packed_params, *, hidden_unit, block_n=None):
    """x_tm: (T, N, D) time-major bf16. Returns tanh(h_T) of last layer: (N, H) f32."""
    T, N, D = x_tm.shape
    H = hidden_unit
    L = len(packed_params)
    n_scr = min(2, max(L - 1, 0))             # ping-pong inter-layer buffers

    if block_n is None:
        block_n = _pick_block_n(N, T, D, H, n_scr)
    assert N % block_n == 0 and (block_n == N or block_n % 8 == 0)

    in_specs = [pl.BlockSpec((T, block_n, D), lambda n: (0, n, 0))]
    flat_w = []
    for (wih, whh, b) in packed_params:
        flat_w += [wih, whh, b]
        in_specs += [pl.BlockSpec(wih.shape, lambda n: (0, 0)),   # replicated
                     pl.BlockSpec(whh.shape, lambda n: (0, 0)),
                     pl.BlockSpec(b.shape, lambda n: (0, 0))]

    scratch = ([pltpu.VMEM((T, block_n, H), jnp.bfloat16) for _ in range(n_scr)]
               + [pltpu.VMEM((T, block_n, 4 * H), jnp.bfloat16)])  # xg buffer

    unroll = True if T <= 16 else 4           # bound live ranges / compile time
    kernel = functools.partial(_fused_lstm_kernel, num_layers=L, hidden_unit=H,
                               num_seq_scratch=n_scr, unroll=unroll)
    return pl.pallas_call(
        kernel,
        out_shape=jax.ShapeDtypeStruct((N, H), jnp.float32),
        grid_spec=pltpu.PrefetchScalarGridSpec(
            num_scalar_prefetch=0,
            grid=(N // block_n,),
            in_specs=in_specs,
            out_specs=pl.BlockSpec((block_n, H), lambda n: (n, 0)),
            scratch_shapes=scratch),
        compiler_params=pltpu.CompilerParams(
            dimension_semantics=("parallel",),
            vmem_limit_bytes=_vmem_limit_bytes()),
    )(x_tm, *flat_w)


# ------------------------------ model wrapper --------------------------------
def init_params(key, num_feature, hidden_unit, layers):
    """Deterministic init mirroring PyTorch LSTM's U(-1/sqrt(H), 1/sqrt(H))."""
    params = []
    d = num_feature
    bound = 1.0 / float(hidden_unit) ** 0.5
    for _ in range(layers):
        key, k1, k2, k3, k4 = jax.random.split(key, 5)
        wih = jax.random.uniform(k1, (d, 4 * hidden_unit), jnp.float32, -bound, bound)
        whh = jax.random.uniform(k2, (hidden_unit, 4 * hidden_unit), jnp.float32, -bound, bound)
        bih = jax.random.uniform(k3, (4 * hidden_unit,), jnp.float32, -bound, bound)
        bhh = jax.random.uniform(k4, (4 * hidden_unit,), jnp.float32, -bound, bound)
        params.append((wih, whh, (bih + bhh).reshape(1, 4 * hidden_unit)))
        d = hidden_unit
    return params


def _pack_params(params, hidden_unit):
    """Fold 0.5 into the i/f/o gate columns (sigmoid-via-tanh in the kernel)
    and cast the MXU operands to bf16 (f32 accumulation stays in-kernel)."""
    H = hidden_unit
    scale = jnp.ones((4 * H,), jnp.float32)
    scale = scale.at[0:2 * H].set(0.5).at[3 * H:4 * H].set(0.5)
    packed = []
    for (wih, whh, b) in params:
        packed.append(((wih * scale).astype(jnp.bfloat16),
                       (whh * scale).astype(jnp.bfloat16),
                       (b * scale).astype(jnp.float32)))
    return packed


def deeplearning_forward(x, params, hidden_unit, block_n=None):
    """x: (batch, input_len, num_cities, num_features) -> (batch, num_cities, hidden_unit)."""
    B, T, C, Fdim = x.shape
    packed = _pack_params(params, hidden_unit)
    # (B,T,C,F) -> (T,B,C,F) -> (T, B*C, F): time-major, row n = b*C + c
    # (same row ordering as PyTorch's permute(0,2,1,3).view(B*C, T, F)).
    # bf16 input halves the HBM->VMEM DMA and the input block's VMEM footprint.
    x_tm = jnp.transpose(x, (1, 0, 2, 3)).reshape(T, B * C, Fdim).astype(jnp.bfloat16)
    last = fused_lstm_pallas(x_tm, packed, hidden_unit=hidden_unit, block_n=block_n)
    return last.reshape(B, C, hidden_unit)


# ------------------------------ pure-JAX reference ---------------------------
def _ref_lstm_layer(x_nm, wih, whh, b):
    N, T, _ = x_nm.shape
    H = whh.shape[0]

    def step(carry, xt):
        h, c = carry
        gates = xt @ wih + h @ whh + b
        i = jax.nn.sigmoid(gates[:, 0 * H:1 * H])
        f = jax.nn.sigmoid(gates[:, 1 * H:2 * H])
        g = jnp.tanh(gates[:, 2 * H:3 * H])
        o = jax.nn.sigmoid(gates[:, 3 * H:4 * H])
        c = f * c + i * g
        h = o * jnp.tanh(c)
        return (h, c), jnp.tanh(h)

    (_, _), ys = jax.lax.scan(
        step,
        (jnp.zeros((N, H), jnp.float32), jnp.zeros((N, H), jnp.float32)),
        jnp.transpose(x_nm, (1, 0, 2)))
    return jnp.transpose(ys, (1, 0, 2))


def _ref_forward(x, params, hidden_unit):
    B, T, C, Fdim = x.shape
    xs = jnp.transpose(x, (0, 2, 1, 3)).reshape(B * C, T, Fdim)
    h = xs
    for (wih, whh, b) in params:
        h = _ref_lstm_layer(h, wih, whh, b)
    return h[:, -1, :].reshape(B, C, hidden_unit)


# ----------------------------------- main ------------------------------------
if __name__ == "__main__":
    # Small shapes consistent with the module's forward.
    batch, input_len, num_cities, num_features = 2, 8, 4, 4
    hidden_unit, layers = 32, 2
    out_len, dropout = 1, 0.0          # dropout / out_len unused in forward

    key = jax.random.PRNGKey(0)
    kx, kp = jax.random.split(key)
    x = jax.random.normal(kx, (batch, input_len, num_cities, num_features), jnp.float32)
    params = init_params(kp, num_features, hidden_unit, layers)

    out = deeplearning_forward(x, params, hidden_unit)
    out = jax.block_until_ready(out)

    ref = _ref_forward(x, params, hidden_unit)
    assert out.shape == (batch, num_cities, hidden_unit), out.shape
    # bf16 matmul operands / bf16 sequence storage -> loosened tolerance vs f32 ref.
    err = jnp.max(jnp.abs(out - ref))
    assert jnp.allclose(out, ref, atol=3e-2, rtol=3e-2), f"mismatch vs JAX reference: {err}"

    print("KERNEL_OK")
</pallas_src>

<mosaic_0001>
module attributes {stable_mosaic.version = 11 : i64} {
  func.func @_fused_lstm_kernel(%arg0: i32, %arg1: memref<8x8x4xbf16, #tpu.memory_space<vmem>>, %arg2: memref<4x128xbf16, #tpu.memory_space<vmem>>, %arg3: memref<32x128xbf16, #tpu.memory_space<vmem>>, %arg4: memref<1x128xf32, #tpu.memory_space<vmem>>, %arg5: memref<32x128xbf16, #tpu.memory_space<vmem>>, %arg6: memref<32x128xbf16, #tpu.memory_space<vmem>>, %arg7: memref<1x128xf32, #tpu.memory_space<vmem>>, %arg8: memref<8x32xf32, #tpu.memory_space<vmem>>, %arg9: memref<8x8x32xbf16, #tpu.memory_space<vmem>>, %arg10: memref<8x8x128xbf16, #tpu.memory_space<vmem>>) attributes {dimension_semantics = [#tpu.dimension_semantics<parallel>], iteration_bounds = array<i64: 1>, scalar_prefetch = 0 : i64, scratch_operands = 2 : i64, tpu.core_type = #tpu.core_type<tc>, window_params = [{transform_indices = @transform_0, window_bounds = array<i64: 8, 8, 4>}, {pipeline_mode = #tpu.pipeline_mode<synchronous>, transform_indices = @transform_1, window_bounds = array<i64: 4, 128>}, {pipeline_mode = #tpu.pipeline_mode<synchronous>, transform_indices = @transform_2, window_bounds = array<i64: 32, 128>}, {pipeline_mode = #tpu.pipeline_mode<synchronous>, transform_indices = @transform_3, window_bounds = array<i64: 1, 128>}, {pipeline_mode = #tpu.pipeline_mode<synchronous>, transform_indices = @transform_4, window_bounds = array<i64: 32, 128>}, {pipeline_mode = #tpu.pipeline_mode<synchronous>, transform_indices = @transform_5, window_bounds = array<i64: 32, 128>}, {pipeline_mode = #tpu.pipeline_mode<synchronous>, transform_indices = @transform_6, window_bounds = array<i64: 1, 128>}, {transform_indices = @transform_7, window_bounds = array<i64: 8, 32>}]} {
    %0 = tpu.iota {dimensions = array<i32: 1>} : vector<8x128xi32>
    %c64_i32 = arith.constant 64 : i32
    %1 = vector.broadcast %c64_i32 : i32 to vector<8x128xi32>
    %2 = arith.cmpi sge, %0, %1 : vector<8x128xi32>
    %c96_i32 = arith.constant 96 : i32
    %3 = vector.broadcast %c96_i32 : i32 to vector<8x128xi32>
    %4 = arith.cmpi slt, %0, %3 : vector<8x128xi32>
    %5 = arith.andi %2, %4 : vector<8x128xi1>
    %c0 = arith.constant 0 : index
    %c0_0 = arith.constant 0 : index
    %6 = vector.load %arg2[%c0, %c0_0] : memref<4x128xbf16, #tpu.memory_space<vmem>>, vector<4x128xbf16>
    %c0_1 = arith.constant 0 : index
    %c0_2 = arith.constant 0 : index
    %7 = vector.load %arg3[%c0_1, %c0_2] : memref<32x128xbf16, #tpu.memory_space<vmem>>, vector<32x128xbf16>
    %c0_3 = arith.constant 0 : index
    %c0_4 = arith.constant 0 : index
    %8 = vector.load %arg4[%c0_3, %c0_4] : memref<1x128xf32, #tpu.memory_space<vmem>>, vector<1x128xf32>
    %c0_i32 = arith.constant 0 : i32
    %9 = arith.index_cast %c0_i32 : i32 to index
    %c0_5 = arith.constant 0 : index
    %c0_6 = arith.constant 0 : index
    %10 = vector.load %arg1[%9, %c0_5, %c0_6] : memref<8x8x4xbf16, #tpu.memory_space<vmem>>, vector<1x8x4xbf16>
    %11 = vector.shape_cast %10 : vector<1x8x4xbf16> to vector<8x4xbf16>
    %cst = arith.constant dense<0.000000e+00> : vector<8x128xf32>
    %12 = tpu.matmul %11, %6, %cst {dimension_numbers = #tpu.dot_dimension_numbers<[1], [0], [0], [1], [0, 0, 1, 1], [], []>} : vector<8x4xbf16>, vector<4x128xbf16>, vector<8x128xf32> -> vector<8x128xf32>
    %13 = vector.broadcast %8 : vector<1x128xf32> to vector<8x128xf32>
    %14 = arith.addf %12, %13 : vector<8x128xf32>
    %15 = arith.truncf %14 : vector<8x128xf32> to vector<8x128xbf16>
    %16 = arith.index_cast %c0_i32 : i32 to index
    %c0_7 = arith.constant 0 : index
    %c0_8 = arith.constant 0 : index
    %17 = vector.load %arg10[%16, %c0_7, %c0_8] : memref<8x8x128xbf16, #tpu.memory_space<vmem>>, vector<1x8x128xbf16>
    %18 = vector.shape_cast %17 : vector<1x8x128xbf16> to vector<8x128xbf16>
    %19 = vector.shape_cast %15 : vector<8x128xbf16> to vector<1x8x128xbf16>
    tpu.vector_store %arg10[%16, %c0_7, %c0_8], %19 {strides = array<i32>} : memref<8x8x128xbf16, #tpu.memory_space<vmem>>, vector<1x8x128xbf16>,
    %c1_i32 = arith.constant 1 : i32
    %20 = arith.index_cast %c1_i32 : i32 to index
    %c0_9 = arith.constant 0 : index
    %c0_10 = arith.constant 0 : index
    %21 = vector.load %arg1[%20, %c0_9, %c0_10] : memref<8x8x4xbf16, #tpu.memory_space<vmem>>, vector<1x8x4xbf16>
    %22 = vector.shape_cast %21 : vector<1x8x4xbf16> to vector<8x4xbf16>
    %cst_11 = arith.constant dense<0.000000e+00> : vector<8x128xf32>
    %23 = tpu.matmul %22, %6, %cst_11 {dimension_numbers = #tpu.dot_dimension_numbers<[1], [0], [0], [1], [0, 0, 1, 1], [], []>} : vector<8x4xbf16>, vector<4x128xbf16>, vector<8x128xf32> -> vector<8x128xf32>
    %24 = vector.broadcast %8 : vector<1x128xf32> to vector<8x128xf32>
    %25 = arith.addf %23, %24 : vector<8x128xf32>
    %26 = arith.truncf %25 : vector<8x128xf32> to vector<8x128xbf16>
    %27 = arith.index_cast %c1_i32 : i32 to index
    %c0_12 = arith.constant 0 : index
    %c0_13 = arith.constant 0 : index
    %28 = vector.load %arg10[%27, %c0_12, %c0_13] : memref<8x8x128xbf16, #tpu.memory_space<vmem>>, vector<1x8x128xbf16>
    %29 = vector.shape_cast %28 : vector<1x8x128xbf16> to vector<8x128xbf16>
    %30 = vector.shape_cast %26 : vector<8x128xbf16> to vector<1x8x128xbf16>
    tpu.vector_store %arg10[%27, %c0_12, %c0_13], %30 {strides = array<i32>} : memref<8x8x128xbf16, #tpu.memory_space<vmem>>, vector<1x8x128xbf16>,
    %c2_i32 = arith.constant 2 : i32
    %31 = arith.index_cast %c2_i32 : i32 to index
    %c0_14 = arith.constant 0 : index
    %c0_15 = arith.constant 0 : index
    %32 = vector.load %arg1[%31, %c0_14, %c0_15] : memref<8x8x4xbf16, #tpu.memory_space<vmem>>, vector<1x8x4xbf16>
    %33 = vector.shape_cast %32 : vector<1x8x4xbf16> to vector<8x4xbf16>
    %cst_16 = arith.constant dense<0.000000e+00> : vector<8x128xf32>
    %34 = tpu.matmul %33, %6, %cst_16 {dimension_numbers = #tpu.dot_dimension_numbers<[1], [0], [0], [1], [0, 0, 1, 1], [], []>} : vector<8x4xbf16>, vector<4x128xbf16>, vector<8x128xf32> -> vector<8x128xf32>
    %35 = vector.broadcast %8 : vector<1x128xf32> to vector<8x128xf32>
    %36 = arith.addf %34, %35 : vector<8x128xf32>
    %37 = arith.truncf %36 : vector<8x128xf32> to vector<8x128xbf16>
    %38 = arith.index_cast %c2_i32 : i32 to index
    %c0_17 = arith.constant 0 : index
    %c0_18 = arith.constant 0 : index
    %39 = vector.load %arg10[%38, %c0_17, %c0_18] : memref<8x8x128xbf16, #tpu.memory_space<vmem>>, vector<1x8x128xbf16>
    %40 = vector.shape_cast %39 : vector<1x8x128xbf16> to vector<8x128xbf16>
    %41 = vector.shape_cast %37 : vector<8x128xbf16> to vector<1x8x128xbf16>
    tpu.vector_store %arg10[%38, %c0_17, %c0_18], %41 {strides = array<i32>} : memref<8x8x128xbf16, #tpu.memory_space<vmem>>, vector<1x8x128xbf16>,
    %c3_i32 = arith.constant 3 : i32
    %42 = arith.index_cast %c3_i32 : i32 to index
    %c0_19 = arith.constant 0 : index
    %c0_20 = arith.constant 0 : index
    %43 = vector.load %arg1[%42, %c0_19, %c0_20] : memref<8x8x4xbf16, #tpu.memory_space<vmem>>, vector<1x8x4xbf16>
    %44 = vector.shape_cast %43 : vector<1x8x4xbf16> to vector<8x4xbf16>
    %cst_21 = arith.constant dense<0.000000e+00> : vector<8x128xf32>
    %45 = tpu.matmul %44, %6, %cst_21 {dimension_numbers = #tpu.dot_dimension_numbers<[1], [0], [0], [1], [0, 0, 1, 1], [], []>} : vector<8x4xbf16>, vector<4x128xbf16>, vector<8x128xf32> -> vector<8x128xf32>
    %46 = vector.broadcast %8 : vector<1x128xf32> to vector<8x128xf32>
    %47 = arith.addf %45, %46 : vector<8x128xf32>
    %48 = arith.truncf %47 : vector<8x128xf32> to vector<8x128xbf16>
    %49 = arith.index_cast %c3_i32 : i32 to index
    %c0_22 = arith.constant 0 : index
    %c0_23 = arith.constant 0 : index
    %50 = vector.load %arg10[%49, %c0_22, %c0_23] : memref<8x8x128xbf16, #tpu.memory_space<vmem>>, vector<1x8x128xbf16>
    %51 = vector.shape_cast %50 : vector<1x8x128xbf16> to vector<8x128xbf16>
    %52 = vector.shape_cast %48 : vector<8x128xbf16> to vector<1x8x128xbf16>
    tpu.vector_store %arg10[%49, %c0_22, %c0_23], %52 {strides = array<i32>} : memref<8x8x128xbf16, #tpu.memory_space<vmem>>, vector<1x8x128xbf16>,
    %c4_i32 = arith.constant 4 : i32
    %53 = arith.index_cast %c4_i32 : i32 to index
    %c0_24 = arith.constant 0 : index
    %c0_25 = arith.constant 0 : index
    %54 = vector.load %arg1[%53, %c0_24, %c0_25] : memref<8x8x4xbf16, #tpu.memory_space<vmem>>, vector<1x8x4xbf16>
    %55 = vector.shape_cast %54 : vector<1x8x4xbf16> to vector<8x4xbf16>
    %cst_26 = arith.constant dense<0.000000e+00> : vector<8x128xf32>
    %56 = tpu.matmul %55, %6, %cst_26 {dimension_numbers = #tpu.dot_dimension_numbers<[1], [0], [0], [1], [0, 0, 1, 1], [], []>} : vector<8x4xbf16>, vector<4x128xbf16>, vector<8x128xf32> -> vector<8x128xf32>
    %57 = vector.broadcast %8 : vector<1x128xf32> to vector<8x128xf32>
    %58 = arith.addf %56, %57 : vector<8x128xf32>
    %59 = arith.truncf %58 : vector<8x128xf32> to vector<8x128xbf16>
    %60 = arith.index_cast %c4_i32 : i32 to index
    %c0_27 = arith.constant 0 : index
    %c0_28 = arith.constant 0 : index
    %61 = vector.load %arg10[%60, %c0_27, %c0_28] : memref<8x8x128xbf16, #tpu.memory_space<vmem>>, vector<1x8x128xbf16>
    %62 = vector.shape_cast %61 : vector<1x8x128xbf16> to vector<8x128xbf16>
    %63 = vector.shape_cast %59 : vector<8x128xbf16> to vector<1x8x128xbf16>
    tpu.vector_store %arg10[%60, %c0_27, %c0_28], %63 {strides = array<i32>} : memref<8x8x128xbf16, #tpu.memory_space<vmem>>, vector<1x8x128xbf16>,
    %c5_i32 = arith.constant 5 : i32
    %64 = arith.index_cast %c5_i32 : i32 to index
    %c0_29 = arith.constant 0 : index
    %c0_30 = arith.constant 0 : index
    %65 = vector.load %arg1[%64, %c0_29, %c0_30] : memref<8x8x4xbf16, #tpu.memory_space<vmem>>, vector<1x8x4xbf16>
    %66 = vector.shape_cast %65 : vector<1x8x4xbf16> to vector<8x4xbf16>
    %cst_31 = arith.constant dense<0.000000e+00> : vector<8x128xf32>
    %67 = tpu.matmul %66, %6, %cst_31 {dimension_numbers = #tpu.dot_dimension_numbers<[1], [0], [0], [1], [0, 0, 1, 1], [], []>} : vector<8x4xbf16>, vector<4x128xbf16>, vector<8x128xf32> -> vector<8x128xf32>
    %68 = vector.broadcast %8 : vector<1x128xf32> to vector<8x128xf32>
    %69 = arith.addf %67, %68 : vector<8x128xf32>
    %70 = arith.truncf %69 : vector<8x128xf32> to vector<8x128xbf16>
    %71 = arith.index_cast %c5_i32 : i32 to index
    %c0_32 = arith.constant 0 : index
    %c0_33 = arith.constant 0 : index
    %72 = vector.load %arg10[%71, %c0_32, %c0_33] : memref<8x8x128xbf16, #tpu.memory_space<vmem>>, vector<1x8x128xbf16>
    %73 = vector.shape_cast %72 : vector<1x8x128xbf16> to vector<8x128xbf16>
    %74 = vector.shape_cast %70 : vector<8x128xbf16> to vector<1x8x128xbf16>
    tpu.vector_store %arg10[%71, %c0_32, %c0_33], %74 {strides = array<i32>} : memref<8x8x128xbf16, #tpu.memory_space<vmem>>, vector<1x8x128xbf16>,
    %c6_i32 = arith.constant 6 : i32
    %75 = arith.index_cast %c6_i32 : i32 to index
    %c0_34 = arith.constant 0 : index
    %c0_35 = arith.constant 0 : index
    %76 = vector.load %arg1[%75, %c0_34, %c0_35] : memref<8x8x4xbf16, #tpu.memory_space<vmem>>, vector<1x8x4xbf16>
    %77 = vector.shape_cast %76 : vector<1x8x4xbf16> to vector<8x4xbf16>
    %cst_36 = arith.constant dense<0.000000e+00> : vector<8x128xf32>
    %78 = tpu.matmul %77, %6, %cst_36 {dimension_numbers = #tpu.dot_dimension_numbers<[1], [0], [0], [1], [0, 0, 1, 1], [], []>} : vector<8x4xbf16>, vector<4x128xbf16>, vector<8x128xf32> -> vector<8x128xf32>
    %79 = vector.broadcast %8 : vector<1x128xf32> to vector<8x128xf32>
    %80 = arith.addf %78, %79 : vector<8x128xf32>
    %81 = arith.truncf %80 : vector<8x128xf32> to vector<8x128xbf16>
    %82 = arith.index_cast %c6_i32 : i32 to index
    %c0_37 = arith.constant 0 : index
    %c0_38 = arith.constant 0 : index
    %83 = vector.load %arg10[%82, %c0_37, %c0_38] : memref<8x8x128xbf16, #tpu.memory_space<vmem>>, vector<1x8x128xbf16>
    %84 = vector.shape_cast %83 : vector<1x8x128xbf16> to vector<8x128xbf16>
    %85 = vector.shape_cast %81 : vector<8x128xbf16> to vector<1x8x128xbf16>
    tpu.vector_store %arg10[%82, %c0_37, %c0_38], %85 {strides = array<i32>} : memref<8x8x128xbf16, #tpu.memory_space<vmem>>, vector<1x8x128xbf16>,
    %c7_i32 = arith.constant 7 : i32
    %86 = arith.index_cast %c7_i32 : i32 to index
    %c0_39 = arith.constant 0 : index
    %c0_40 = arith.constant 0 : index
    %87 = vector.load %arg1[%86, %c0_39, %c0_40] : memref<8x8x4xbf16, #tpu.memory_space<vmem>>, vector<1x8x4xbf16>
    %88 = vector.shape_cast %87 : vector<1x8x4xbf16> to vector<8x4xbf16>
    %cst_41 = arith.constant dense<0.000000e+00> : vector<8x128xf32>
    %89 = tpu.matmul %88, %6, %cst_41 {dimension_numbers = #tpu.dot_dimension_numbers<[1], [0], [0], [1], [0, 0, 1, 1], [], []>} : vector<8x4xbf16>, vector<4x128xbf16>, vector<8x128xf32> -> vector<8x128xf32>
    %90 = vector.broadcast %8 : vector<1x128xf32> to vector<8x128xf32>
    %91 = arith.addf %89, %90 : vector<8x128xf32>
    %92 = arith.truncf %91 : vector<8x128xf32> to vector<8x128xbf16>
    %93 = arith.index_cast %c7_i32 : i32 to index
    %c0_42 = arith.constant 0 : index
    %c0_43 = arith.constant 0 : index
    %94 = vector.load %arg10[%93, %c0_42, %c0_43] : memref<8x8x128xbf16, #tpu.memory_space<vmem>>, vector<1x8x128xbf16>
    %95 = vector.shape_cast %94 : vector<1x8x128xbf16> to vector<8x128xbf16>
    %96 = vector.shape_cast %92 : vector<8x128xbf16> to vector<1x8x128xbf16>
    tpu.vector_store %arg10[%93, %c0_42, %c0_43], %96 {strides = array<i32>} : memref<8x8x128xbf16, #tpu.memory_space<vmem>>, vector<1x8x128xbf16>,
    %c8_i32 = arith.constant 8 : i32
    %cst_44 = arith.constant 0.000000e+00 : f32
    %97 = vector.broadcast %cst_44 : f32 to vector<8x32xf32>
    %cst_45 = arith.constant 0.000000e+00 : f32
    %98 = vector.broadcast %cst_45 : f32 to vector<8x32xf32>
    %c0_i32_46 = arith.constant 0 : i32
    %99 = arith.truncf %97 : vector<8x32xf32> to vector<8x32xbf16>
    %cst_47 = arith.constant dense<0.000000e+00> : vector<8x128xf32>
    %100 = tpu.matmul %99, %7, %cst_47 {dimension_numbers = #tpu.dot_dimension_numbers<[1], [0], [0], [1], [0, 0, 1, 1], [], []>} : vector<8x32xbf16>, vector<32x128xbf16>, vector<8x128xf32> -> vector<8x128xf32>
    %101 = arith.index_cast %c0_i32_46 : i32 to index
    %c0_48 = arith.constant 0 : index
    %c0_49 = arith.constant 0 : index
    %102 = vector.load %arg10[%101, %c0_48, %c0_49] : memref<8x8x128xbf16, #tpu.memory_space<vmem>>, vector<1x8x128xbf16>
    %103 = vector.shape_cast %102 : vector<1x8x128xbf16> to vector<8x128xbf16>
    %104 = arith.extf %103 : vector<8x128xbf16> to vector<8x128xf32>
    %105 = arith.addf %100, %104 : vector<8x128xf32>
    %106 = math.tanh %105 : vector<8x128xf32>
    %cst_50 = arith.constant 1.000000e+00 : f32
    %107 = vector.broadcast %cst_50 : f32 to vector<8x128xf32>
    %108 = arith.addf %106, %107 : vector<8x128xf32>
    %cst_51 = arith.constant 5.000000e-01 : f32
    %109 = vector.broadcast %cst_51 : f32 to vector<8x128xf32>
    %110 = arith.mulf %109, %108 : vector<8x128xf32>
    %111 = arith.select %5, %106, %110 : vector<8x128xi1>, vector<8x128xf32>
    %112 = vector.extract_strided_slice %111 {offsets = [0, 0], sizes = [8, 32], strides = [1, 1]} : vector<8x128xf32> to vector<8x32xf32>
    %113 = vector.extract_strided_slice %111 {offsets = [0, 32], sizes = [8, 32], strides = [1, 1]} : vector<8x128xf32> to vector<8x32xf32>
    %114 = vector.extract_strided_slice %111 {offsets = [0, 64], sizes = [8, 32], strides = [1, 1]} : vector<8x128xf32> to vector<8x32xf32>
    %115 = vector.extract_strided_slice %111 {offsets = [0, 96], sizes = [8, 32], strides = [1, 1]} : vector<8x128xf32> to vector<8x32xf32>
    %116 = arith.mulf %113, %98 : vector<8x32xf32>
    %117 = arith.mulf %112, %114 : vector<8x32xf32>
    %118 = arith.addf %116, %117 : vector<8x32xf32>
    %119 = math.tanh %118 : vector<8x32xf32>
    %120 = arith.mulf %115, %119 : vector<8x32xf32>
    %121 = math.tanh %120 : vector<8x32xf32>
    %122 = arith.truncf %121 : vector<8x32xf32> to vector<8x32xbf16>
    %123 = arith.index_cast %c0_i32_46 : i32 to index
    %c0_52 = arith.constant 0 : index
    %c0_53 = arith.constant 0 : index
    %124 = vector.load %arg9[%123, %c0_52, %c0_53] : memref<8x8x32xbf16, #tpu.memory_space<vmem>>, vector<1x8x32xbf16>
    %125 = vector.shape_cast %124 : vector<1x8x32xbf16> to vector<8x32xbf16>
    %126 = vector.shape_cast %122 : vector<8x32xbf16> to vector<1x8x32xbf16>
    tpu.vector_store %arg9[%123, %c0_52, %c0_53], %126 {strides = array<i32>} : memref<8x8x32xbf16, #tpu.memory_space<vmem>>, vector<1x8x32xbf16>,
    %c1_i32_54 = arith.constant 1 : i32
    %127 = arith.truncf %120 : vector<8x32xf32> to vector<8x32xbf16>
    %cst_55 = arith.constant dense<0.000000e+00> : vector<8x128xf32>
    %128 = tpu.matmul %127, %7, %cst_55 {dimension_numbers = #tpu.dot_dimension_numbers<[1], [0], [0], [1], [0, 0, 1, 1], [], []>} : vector<8x32xbf16>, vector<32x128xbf16>, vector<8x128xf32> -> vector<8x128xf32>
    %129 = arith.index_cast %c1_i32_54 : i32 to index
    %c0_56 = arith.constant 0 : index
    %c0_57 = arith.constant 0 : index
    %130 = vector.load %arg10[%129, %c0_56, %c0_57] : memref<8x8x128xbf16, #tpu.memory_space<vmem>>, vector<1x8x128xbf16>
    %131 = vector.shape_cast %130 : vector<1x8x128xbf16> to vector<8x128xbf16>
    %132 = arith.extf %131 : vector<8x128xbf16> to vector<8x128xf32>
    %133 = arith.addf %128, %132 : vector<8x128xf32>
    %134 = math.tanh %133 : vector<8x128xf32>
    %cst_58 = arith.constant 1.000000e+00 : f32
    %135 = vector.broadcast %cst_58 : f32 to vector<8x128xf32>
    %136 = arith.addf %134, %135 : vector<8x128xf32>
    %cst_59 = arith.constant 5.000000e-01 : f32
    %137 = vector.broadcast %cst_59 : f32 to vector<8x128xf32>
    %138 = arith.mulf %137, %136 : vector<8x128xf32>
    %139 = arith.select %5, %134, %138 : vector<8x128xi1>, vector<8x128xf32>
    %140 = vector.extract_strided_slice %139 {offsets = [0, 0], sizes = [8, 32], strides = [1, 1]} : vector<8x128xf32> to vector<8x32xf32>
    %141 = vector.extract_strided_slice %139 {offsets = [0, 32], sizes = [8, 32], strides = [1, 1]} : vector<8x128xf32> to vector<8x32xf32>
    %142 = vector.extract_strided_slice %139 {offsets = [0, 64], sizes = [8, 32], strides = [1, 1]} : vector<8x128xf32> to vector<8x32xf32>
    %143 = vector.extract_strided_slice %139 {offsets = [0, 96], sizes = [8, 32], strides = [1, 1]} : vector<8x128xf32> to vector<8x32xf32>
    %144 = arith.mulf %141, %118 : vector<8x32xf32>
    %145 = arith.mulf %140, %142 : vector<8x32xf32>
    %146 = arith.addf %144, %145 : vector<8x32xf32>
    %147 = math.tanh %146 : vector<8x32xf32>
    %148 = arith.mulf %143, %147 : vector<8x32xf32>
    %149 = math.tanh %148 : vector<8x32xf32>
    %150 = arith.truncf %149 : vector<8x32xf32> to vector<8x32xbf16>
    %151 = arith.index_cast %c1_i32_54 : i32 to index
    %c0_60 = arith.constant 0 : index
    %c0_61 = arith.constant 0 : index
    %152 = vector.load %arg9[%151, %c0_60, %c0_61] : memref<8x8x32xbf16, #tpu.memory_space<vmem>>, vector<1x8x32xbf16>
    %153 = vector.shape_cast %152 : vector<1x8x32xbf16> to vector<8x32xbf16>
    %154 = vector.shape_cast %150 : vector<8x32xbf16> to vector<1x8x32xbf16>
    tpu.vector_store %arg9[%151, %c0_60, %c0_61], %154 {strides = array<i32>} : memref<8x8x32xbf16, #tpu.memory_space<vmem>>, vector<1x8x32xbf16>,
    %c2_i32_62 = arith.constant 2 : i32
    %155 = arith.truncf %148 : vector<8x32xf32> to vector<8x32xbf16>
    %cst_63 = arith.constant dense<0.000000e+00> : vector<8x128xf32>
    %156 = tpu.matmul %155, %7, %cst_63 {dimension_numbers = #tpu.dot_dimension_numbers<[1], [0], [0], [1], [0, 0, 1, 1], [], []>} : vector<8x32xbf16>, vector<32x128xbf16>, vector<8x128xf32> -> vector<8x128xf32>
    %157 = arith.index_cast %c2_i32_62 : i32 to index
    %c0_64 = arith.constant 0 : index
    %c0_65 = arith.constant 0 : index
    %158 = vector.load %arg10[%157, %c0_64, %c0_65] : memref<8x8x128xbf16, #tpu.memory_space<vmem>>, vector<1x8x128xbf16>
    %159 = vector.shape_cast %158 : vector<1x8x128xbf16> to vector<8x128xbf16>
    %160 = arith.extf %159 : vector<8x128xbf16> to vector<8x128xf32>
    %161 = arith.addf %156, %160 : vector<8x128xf32>
    %162 = math.tanh %161 : vector<8x128xf32>
    %cst_66 = arith.constant 1.000000e+00 : f32
    %163 = vector.broadcast %cst_66 : f32 to vector<8x128xf32>
    %164 = arith.addf %162, %163 : vector<8x128xf32>
    %cst_67 = arith.constant 5.000000e-01 : f32
    %165 = vector.broadcast %cst_67 : f32 to vector<8x128xf32>
    %166 = arith.mulf %165, %164 : vector<8x128xf32>
    %167 = arith.select %5, %162, %166 : vector<8x128xi1>, vector<8x128xf32>
    %168 = vector.extract_strided_slice %167 {offsets = [0, 0], sizes = [8, 32], strides = [1, 1]} : vector<8x128xf32> to vector<8x32xf32>
    %169 = vector.extract_strided_slice %167 {offsets = [0, 32], sizes = [8, 32], strides = [1, 1]} : vector<8x128xf32> to vector<8x32xf32>
    %170 = vector.extract_strided_slice %167 {offsets = [0, 64], sizes = [8, 32], strides = [1, 1]} : vector<8x128xf32> to vector<8x32xf32>
    %171 = vector.extract_strided_slice %167 {offsets = [0, 96], sizes = [8, 32], strides = [1, 1]} : vector<8x128xf32> to vector<8x32xf32>
    %172 = arith.mulf %169, %146 : vector<8x32xf32>
    %173 = arith.mulf %168, %170 : vector<8x32xf32>
    %174 = arith.addf %172, %173 : vector<8x32xf32>
    %175 = math.tanh %174 : vector<8x32xf32>
    %176 = arith.mulf %171, %175 : vector<8x32xf32>
    %177 = math.tanh %176 : vector<8x32xf32>
    %178 = arith.truncf %177 : vector<8x32xf32> to vector<8x32xbf16>
    %179 = arith.index_cast %c2_i32_62 : i32 to index
    %c0_68 = arith.constant 0 : index
    %c0_69 = arith.constant 0 : index
    %180 = vector.load %arg9[%179, %c0_68, %c0_69] : memref<8x8x32xbf16, #tpu.memory_space<vmem>>, vector<1x8x32xbf16>
    %181 = vector.shape_cast %180 : vector<1x8x32xbf16> to vector<8x32xbf16>
    %182 = vector.shape_cast %178 : vector<8x32xbf16> to vector<1x8x32xbf16>
    tpu.vector_store %arg9[%179, %c0_68, %c0_69], %182 {strides = array<i32>} : memref<8x8x32xbf16, #tpu.memory_space<vmem>>, vector<1x8x32xbf16>,
    %c3_i32_70 = arith.constant 3 : i32
    %183 = arith.truncf %176 : vector<8x32xf32> to vector<8x32xbf16>
    %cst_71 = arith.constant dense<0.000000e+00> : vector<8x128xf32>
    %184 = tpu.matmul %183, %7, %cst_71 {dimension_numbers = #tpu.dot_dimension_numbers<[1], [0], [0], [1], [0, 0, 1, 1], [], []>} : vector<8x32xbf16>, vector<32x128xbf16>, vector<8x128xf32> -> vector<8x128xf32>
    %185 = arith.index_cast %c3_i32_70 : i32 to index
    %c0_72 = arith.constant 0 : index
    %c0_73 = arith.constant 0 : index
    %186 = vector.load %arg10[%185, %c0_72, %c0_73] : memref<8x8x128xbf16, #tpu.memory_space<vmem>>, vector<1x8x128xbf16>
    %187 = vector.shape_cast %186 : vector<1x8x128xbf16> to vector<8x128xbf16>
    %188 = arith.extf %187 : vector<8x128xbf16> to vector<8x128xf32>
    %189 = arith.addf %184, %188 : vector<8x128xf32>
    %190 = math.tanh %189 : vector<8x128xf32>
    %cst_74 = arith.constant 1.000000e+00 : f32
    %191 = vector.broadcast %cst_74 : f32 to vector<8x128xf32>
    %192 = arith.addf %190, %191 : vector<8x128xf32>
    %cst_75 = arith.constant 5.000000e-01 : f32
    %193 = vector.broadcast %cst_75 : f32 to vector<8x128xf32>
    %194 = arith.mulf %193, %192 : vector<8x128xf32>
    %195 = arith.select %5, %190, %194 : vector<8x128xi1>, vector<8x128xf32>
    %196 = vector.extract_strided_slice %195 {offsets = [0, 0], sizes = [8, 32], strides = [1, 1]} : vector<8x128xf32> to vector<8x32xf32>
    %197 = vector.extract_strided_slice %195 {offsets = [0, 32], sizes = [8, 32], strides = [1, 1]} : vector<8x128xf32> to vector<8x32xf32>
    %198 = vector.extract_strided_slice %195 {offsets = [0, 64], sizes = [8, 32], strides = [1, 1]} : vector<8x128xf32> to vector<8x32xf32>
    %199 = vector.extract_strided_slice %195 {offsets = [0, 96], sizes = [8, 32], strides = [1, 1]} : vector<8x128xf32> to vector<8x32xf32>
    %200 = arith.mulf %197, %174 : vector<8x32xf32>
    %201 = arith.mulf %196, %198 : vector<8x32xf32>
    %202 = arith.addf %200, %201 : vector<8x32xf32>
    %203 = math.tanh %202 : vector<8x32xf32>
    %204 = arith.mulf %199, %203 : vector<8x32xf32>
    %205 = math.tanh %204 : vector<8x32xf32>
    %206 = arith.truncf %205 : vector<8x32xf32> to vector<8x32xbf16>
    %207 = arith.index_cast %c3_i32_70 : i32 to index
    %c0_76 = arith.constant 0 : index
    %c0_77 = arith.constant 0 : index
    %208 = vector.load %arg9[%207, %c0_76, %c0_77] : memref<8x8x32xbf16, #tpu.memory_space<vmem>>, vector<1x8x32xbf16>
    %209 = vector.shape_cast %208 : vector<1x8x32xbf16> to vector<8x32xbf16>
    %210 = vector.shape_cast %206 : vector<8x32xbf16> to vector<1x8x32xbf16>
    tpu.vector_store %arg9[%207, %c0_76, %c0_77], %210 {strides = array<i32>} : memref<8x8x32xbf16, #tpu.memory_space<vmem>>, vector<1x8x32xbf16>,
    %c4_i32_78 = arith.constant 4 : i32
    %211 = arith.truncf %204 : vector<8x32xf32> to vector<8x32xbf16>
    %cst_79 = arith.constant dense<0.000000e+00> : vector<8x128xf32>
    %212 = tpu.matmul %211, %7, %cst_79 {dimension_numbers = #tpu.dot_dimension_numbers<[1], [0], [0], [1], [0, 0, 1, 1], [], []>} : vector<8x32xbf16>, vector<32x128xbf16>, vector<8x128xf32> -> vector<8x128xf32>
    %213 = arith.index_cast %c4_i32_78 : i32 to index
    %c0_80 = arith.constant 0 : index
    %c0_81 = arith.constant 0 : index
    %214 = vector.load %arg10[%213, %c0_80, %c0_81] : memref<8x8x128xbf16, #tpu.memory_space<vmem>>, vector<1x8x128xbf16>
    %215 = vector.shape_cast %214 : vector<1x8x128xbf16> to vector<8x128xbf16>
    %216 = arith.extf %215 : vector<8x128xbf16> to vector<8x128xf32>
    %217 = arith.addf %212, %216 : vector<8x128xf32>
    %218 = math.tanh %217 : vector<8x128xf32>
    %cst_82 = arith.constant 1.000000e+00 : f32
    %219 = vector.broadcast %cst_82 : f32 to vector<8x128xf32>
    %220 = arith.addf %218, %219 : vector<8x128xf32>
    %cst_83 = arith.constant 5.000000e-01 : f32
    %221 = vector.broadcast %cst_83 : f32 to vector<8x128xf32>
    %222 = arith.mulf %221, %220 : vector<8x128xf32>
    %223 = arith.select %5, %218, %222 : vector<8x128xi1>, vector<8x128xf32>
    %224 = vector.extract_strided_slice %223 {offsets = [0, 0], sizes = [8, 32], strides = [1, 1]} : vector<8x128xf32> to vector<8x32xf32>
    %225 = vector.extract_strided_slice %223 {offsets = [0, 32], sizes = [8, 32], strides = [1, 1]} : vector<8x128xf32> to vector<8x32xf32>
    %226 = vector.extract_strided_slice %223 {offsets = [0, 64], sizes = [8, 32], strides = [1, 1]} : vector<8x128xf32> to vector<8x32xf32>
    %227 = vector.extract_strided_slice %223 {offsets = [0, 96], sizes = [8, 32], strides = [1, 1]} : vector<8x128xf32> to vector<8x32xf32>
    %228 = arith.mulf %225, %202 : vector<8x32xf32>
    %229 = arith.mulf %224, %226 : vector<8x32xf32>
    %230 = arith.addf %228, %229 : vector<8x32xf32>
    %231 = math.tanh %230 : vector<8x32xf32>
    %232 = arith.mulf %227, %231 : vector<8x32xf32>
    %233 = math.tanh %232 : vector<8x32xf32>
    %234 = arith.truncf %233 : vector<8x32xf32> to vector<8x32xbf16>
    %235 = arith.index_cast %c4_i32_78 : i32 to index
    %c0_84 = arith.constant 0 : index
    %c0_85 = arith.constant 0 : index
    %236 = vector.load %arg9[%235, %c0_84, %c0_85] : memref<8x8x32xbf16, #tpu.memory_space<vmem>>, vector<1x8x32xbf16>
    %237 = vector.shape_cast %236 : vector<1x8x32xbf16> to vector<8x32xbf16>
    %238 = vector.shape_cast %234 : vector<8x32xbf16> to vector<1x8x32xbf16>
    tpu.vector_store %arg9[%235, %c0_84, %c0_85], %238 {strides = array<i32>} : memref<8x8x32xbf16, #tpu.memory_space<vmem>>, vector<1x8x32xbf16>,
    %c5_i32_86 = arith.constant 5 : i32
    %239 = arith.truncf %232 : vector<8x32xf32> to vector<8x32xbf16>
    %cst_87 = arith.constant dense<0.000000e+00> : vector<8x128xf32>
    %240 = tpu.matmul %239, %7, %cst_87 {dimension_numbers = #tpu.dot_dimension_numbers<[1], [0], [0], [1], [0, 0, 1, 1], [], []>} : vector<8x32xbf16>, vector<32x128xbf16>, vector<8x128xf32> -> vector<8x128xf32>
    %241 = arith.index_cast %c5_i32_86 : i32 to index
    %c0_88 = arith.constant 0 : index
    %c0_89 = arith.constant 0 : index
    %242 = vector.load %arg10[%241, %c0_88, %c0_89] : memref<8x8x128xbf16, #tpu.memory_space<vmem>>, vector<1x8x128xbf16>
    %243 = vector.shape_cast %242 : vector<1x8x128xbf16> to vector<8x128xbf16>
    %244 = arith.extf %243 : vector<8x128xbf16> to vector<8x128xf32>
    %245 = arith.addf %240, %244 : vector<8x128xf32>
    %246 = math.tanh %245 : vector<8x128xf32>
    %cst_90 = arith.constant 1.000000e+00 : f32
    %247 = vector.broadcast %cst_90 : f32 to vector<8x128xf32>
    %248 = arith.addf %246, %247 : vector<8x128xf32>
    %cst_91 = arith.constant 5.000000e-01 : f32
    %249 = vector.broadcast %cst_91 : f32 to vector<8x128xf32>
    %250 = arith.mulf %249, %248 : vector<8x128xf32>
    %251 = arith.select %5, %246, %250 : vector<8x128xi1>, vector<8x128xf32>
    %252 = vector.extract_strided_slice %251 {offsets = [0, 0], sizes = [8, 32], strides = [1, 1]} : vector<8x128xf32> to vector<8x32xf32>
    %253 = vector.extract_strided_slice %251 {offsets = [0, 32], sizes = [8, 32], strides = [1, 1]} : vector<8x128xf32> to vector<8x32xf32>
    %254 = vector.extract_strided_slice %251 {offsets = [0, 64], sizes = [8, 32], strides = [1, 1]} : vector<8x128xf32> to vector<8x32xf32>
    %255 = vector.extract_strided_slice %251 {offsets = [0, 96], sizes = [8, 32], strides = [1, 1]} : vector<8x128xf32> to vector<8x32xf32>
    %256 = arith.mulf %253, %230 : vector<8x32xf32>
    %257 = arith.mulf %252, %254 : vector<8x32xf32>
    %258 = arith.addf %256, %257 : vector<8x32xf32>
    %259 = math.tanh %258 : vector<8x32xf32>
    %260 = arith.mulf %255, %259 : vector<8x32xf32>
    %261 = math.tanh %260 : vector<8x32xf32>
    %262 = arith.truncf %261 : vector<8x32xf32> to vector<8x32xbf16>
    %263 = arith.index_cast %c5_i32_86 : i32 to index
    %c0_92 = arith.constant 0 : index
    %c0_93 = arith.constant 0 : index
    %264 = vector.load %arg9[%263, %c0_92, %c0_93] : memref<8x8x32xbf16, #tpu.memory_space<vmem>>, vector<1x8x32xbf16>
    %265 = vector.shape_cast %264 : vector<1x8x32xbf16> to vector<8x32xbf16>
    %266 = vector.shape_cast %262 : vector<8x32xbf16> to vector<1x8x32xbf16>
    tpu.vector_store %arg9[%263, %c0_92, %c0_93], %266 {strides = array<i32>} : memref<8x8x32xbf16, #tpu.memory_space<vmem>>, vector<1x8x32xbf16>,
    %c6_i32_94 = arith.constant 6 : i32
    %267 = arith.truncf %260 : vector<8x32xf32> to vector<8x32xbf16>
    %cst_95 = arith.constant dense<0.000000e+00> : vector<8x128xf32>
    %268 = tpu.matmul %267, %7, %cst_95 {dimension_numbers = #tpu.dot_dimension_numbers<[1], [0], [0], [1], [0, 0, 1, 1], [], []>} : vector<8x32xbf16>, vector<32x128xbf16>, vector<8x128xf32> -> vector<8x128xf32>
    %269 = arith.index_cast %c6_i32_94 : i32 to index
    %c0_96 = arith.constant 0 : index
    %c0_97 = arith.constant 0 : index
    %270 = vector.load %arg10[%269, %c0_96, %c0_97] : memref<8x8x128xbf16, #tpu.memory_space<vmem>>, vector<1x8x128xbf16>
    %271 = vector.shape_cast %270 : vector<1x8x128xbf16> to vector<8x128xbf16>
    %272 = arith.extf %271 : vector<8x128xbf16> to vector<8x128xf32>
    %273 = arith.addf %268, %272 : vector<8x128xf32>
    %274 = math.tanh %273 : vector<8x128xf32>
    %cst_98 = arith.constant 1.000000e+00 : f32
    %275 = vector.broadcast %cst_98 : f32 to vector<8x128xf32>
    %276 = arith.addf %274, %275 : vector<8x128xf32>
    %cst_99 = arith.constant 5.000000e-01 : f32
    %277 = vector.broadcast %cst_99 : f32 to vector<8x128xf32>
    %278 = arith.mulf %277, %276 : vector<8x128xf32>
    %279 = arith.select %5, %274, %278 : vector<8x128xi1>, vector<8x128xf32>
    %280 = vector.extract_strided_slice %279 {offsets = [0, 0], sizes = [8, 32], strides = [1, 1]} : vector<8x128xf32> to vector<8x32xf32>
    %281 = vector.extract_strided_slice %279 {offsets = [0, 32], sizes = [8, 32], strides = [1, 1]} : vector<8x128xf32> to vector<8x32xf32>
    %282 = vector.extract_strided_slice %279 {offsets = [0, 64], sizes = [8, 32], strides = [1, 1]} : vector<8x128xf32> to vector<8x32xf32>
    %283 = vector.extract_strided_slice %279 {offsets = [0, 96], sizes = [8, 32], strides = [1, 1]} : vector<8x128xf32> to vector<8x32xf32>
    %284 = arith.mulf %281, %258 : vector<8x32xf32>
    %285 = arith.mulf %280, %282 : vector<8x32xf32>
    %286 = arith.addf %284, %285 : vector<8x32xf32>
    %287 = math.tanh %286 : vector<8x32xf32>
    %288 = arith.mulf %283, %287 : vector<8x32xf32>
    %289 = math.tanh %288 : vector<8x32xf32>
    %290 = arith.truncf %289 : vector<8x32xf32> to vector<8x32xbf16>
    %291 = arith.index_cast %c6_i32_94 : i32 to index
    %c0_100 = arith.constant 0 : index
    %c0_101 = arith.constant 0 : index
    %292 = vector.load %arg9[%291, %c0_100, %c0_101] : memref<8x8x32xbf16, #tpu.memory_space<vmem>>, vector<1x8x32xbf16>
    %293 = vector.shape_cast %292 : vector<1x8x32xbf16> to vector<8x32xbf16>
    %294 = vector.shape_cast %290 : vector<8x32xbf16> to vector<1x8x32xbf16>
    tpu.vector_store %arg9[%291, %c0_100, %c0_101], %294 {strides = array<i32>} : memref<8x8x32xbf16, #tpu.memory_space<vmem>>, vector<1x8x32xbf16>,
    %c7_i32_102 = arith.constant 7 : i32
    %295 = arith.truncf %288 : vector<8x32xf32> to vector<8x32xbf16>
    %cst_103 = arith.constant dense<0.000000e+00> : vector<8x128xf32>
    %296 = tpu.matmul %295, %7, %cst_103 {dimension_numbers = #tpu.dot_dimension_numbers<[1], [0], [0], [1], [0, 0, 1, 1], [], []>} : vector<8x32xbf16>, vector<32x128xbf16>, vector<8x128xf32> -> vector<8x128xf32>
    %297 = arith.index_cast %c7_i32_102 : i32 to index
    %c0_104 = arith.constant 0 : index
    %c0_105 = arith.constant 0 : index
    %298 = vector.load %arg10[%297, %c0_104, %c0_105] : memref<8x8x128xbf16, #tpu.memory_space<vmem>>, vector<1x8x128xbf16>
    %299 = vector.shape_cast %298 : vector<1x8x128xbf16> to vector<8x128xbf16>
    %300 = arith.extf %299 : vector<8x128xbf16> to vector<8x128xf32>
    %301 = arith.addf %296, %300 : vector<8x128xf32>
    %302 = math.tanh %301 : vector<8x128xf32>
    %cst_106 = arith.constant 1.000000e+00 : f32
    %303 = vector.broadcast %cst_106 : f32 to vector<8x128xf32>
    %304 = arith.addf %302, %303 : vector<8x128xf32>
    %cst_107 = arith.constant 5.000000e-01 : f32
    %305 = vector.broadcast %cst_107 : f32 to vector<8x128xf32>
    %306 = arith.mulf %305, %304 : vector<8x128xf32>
    %307 = arith.select %5, %302, %306 : vector<8x128xi1>, vector<8x128xf32>
    %308 = vector.extract_strided_slice %307 {offsets = [0, 0], sizes = [8, 32], strides = [1, 1]} : vector<8x128xf32> to vector<8x32xf32>
    %309 = vector.extract_strided_slice %307 {offsets = [0, 32], sizes = [8, 32], strides = [1, 1]} : vector<8x128xf32> to vector<8x32xf32>
    %310 = vector.extract_strided_slice %307 {offsets = [0, 64], sizes = [8, 32], strides = [1, 1]} : vector<8x128xf32> to vector<8x32xf32>
    %311 = vector.extract_strided_slice %307 {offsets = [0, 96], sizes = [8, 32], strides = [1, 1]} : vector<8x128xf32> to vector<8x32xf32>
    %312 = arith.mulf %309, %286 : vector<8x32xf32>
    %313 = arith.mulf %308, %310 : vector<8x32xf32>
    %314 = arith.addf %312, %313 : vector<8x32xf32>
    %315 = math.tanh %314 : vector<8x32xf32>
    %316 = arith.mulf %311, %315 : vector<8x32xf32>
    %317 = math.tanh %316 : vector<8x32xf32>
    %318 = arith.truncf %317 : vector<8x32xf32> to vector<8x32xbf16>
    %319 = arith.index_cast %c7_i32_102 : i32 to index
    %c0_108 = arith.constant 0 : index
    %c0_109 = arith.constant 0 : index
    %320 = vector.load %arg9[%319, %c0_108, %c0_109] : memref<8x8x32xbf16, #tpu.memory_space<vmem>>, vector<1x8x32xbf16>
    %321 = vector.shape_cast %320 : vector<1x8x32xbf16> to vector<8x32xbf16>
    %322 = vector.shape_cast %318 : vector<8x32xbf16> to vector<1x8x32xbf16>
    tpu.vector_store %arg9[%319, %c0_108, %c0_109], %322 {strides = array<i32>} : memref<8x8x32xbf16, #tpu.memory_space<vmem>>, vector<1x8x32xbf16>,
    %c8_i32_110 = arith.constant 8 : i32
    %c0_111 = arith.constant 0 : index
    %c0_112 = arith.constant 0 : index
    %323 = vector.load %arg5[%c0_111, %c0_112] : memref<32x128xbf16, #tpu.memory_space<vmem>>, vector<32x128xbf16>
    %c0_113 = arith.constant 0 : index
    %c0_114 = arith.constant 0 : index
    %324 = vector.load %arg6[%c0_113, %c0_114] : memref<32x128xbf16, #tpu.memory_space<vmem>>, vector<32x128xbf16>
    %c0_115 = arith.constant 0 : index
    %c0_116 = arith.constant 0 : index
    %325 = vector.load %arg7[%c0_115, %c0_116] : memref<1x128xf32, #tpu.memory_space<vmem>>, vector<1x128xf32>
    %c0_i32_117 = arith.constant 0 : i32
    %326 = arith.index_cast %c0_i32_117 : i32 to index
    %c0_118 = arith.constant 0 : index
    %c0_119 = arith.constant 0 : index
    %327 = vector.load %arg9[%326, %c0_118, %c0_119] : memref<8x8x32xbf16, #tpu.memory_space<vmem>>, vector<1x8x32xbf16>
    %328 = vector.shape_cast %327 : vector<1x8x32xbf16> to vector<8x32xbf16>
    %cst_120 = arith.constant dense<0.000000e+00> : vector<8x128xf32>
    %329 = tpu.matmul %328, %323, %cst_120 {dimension_numbers = #tpu.dot_dimension_numbers<[1], [0], [0], [1], [0, 0, 1, 1], [], []>} : vector<8x32xbf16>, vector<32x128xbf16>, vector<8x128xf32> -> vector<8x128xf32>
    %330 = vector.broadcast %325 : vector<1x128xf32> to vector<8x128xf32>
    %331 = arith.addf %329, %330 : vector<8x128xf32>
    %332 = arith.truncf %331 : vector<8x128xf32> to vector<8x128xbf16>
    %333 = arith.index_cast %c0_i32_117 : i32 to index
    %c0_121 = arith.constant 0 : index
    %c0_122 = arith.constant 0 : index
    %334 = vector.load %arg10[%333, %c0_121, %c0_122] : memref<8x8x128xbf16, #tpu.memory_space<vmem>>, vector<1x8x128xbf16>
    %335 = vector.shape_cast %334 : vector<1x8x128xbf16> to vector<8x128xbf16>
    %336 = vector.shape_cast %332 : vector<8x128xbf16> to vector<1x8x128xbf16>
    tpu.vector_store %arg10[%333, %c0_121, %c0_122], %336 {strides = array<i32>} : memref<8x8x128xbf16, #tpu.memory_space<vmem>>, vector<1x8x128xbf16>,
    %c1_i32_123 = arith.constant 1 : i32
    %337 = arith.index_cast %c1_i32_123 : i32 to index
    %c0_124 = arith.constant 0 : index
    %c0_125 = arith.constant 0 : index
    %338 = vector.load %arg9[%337, %c0_124, %c0_125] : memref<8x8x32xbf16, #tpu.memory_space<vmem>>, vector<1x8x32xbf16>
    %339 = vector.shape_cast %338 : vector<1x8x32xbf16> to vector<8x32xbf16>
    %cst_126 = arith.constant dense<0.000000e+00> : vector<8x128xf32>
    %340 = tpu.matmul %339, %323, %cst_126 {dimension_numbers = #tpu.dot_dimension_numbers<[1], [0], [0], [1], [0, 0, 1, 1], [], []>} : vector<8x32xbf16>, vector<32x128xbf16>, vector<8x128xf32> -> vector<8x128xf32>
    %341 = vector.broadcast %325 : vector<1x128xf32> to vector<8x128xf32>
    %342 = arith.addf %340, %341 : vector<8x128xf32>
    %343 = arith.truncf %342 : vector<8x128xf32> to vector<8x128xbf16>
    %344 = arith.index_cast %c1_i32_123 : i32 to index
    %c0_127 = arith.constant 0 : index
    %c0_128 = arith.constant 0 : index
    %345 = vector.load %arg10[%344, %c0_127, %c0_128] : memref<8x8x128xbf16, #tpu.memory_space<vmem>>, vector<1x8x128xbf16>
    %346 = vector.shape_cast %345 : vector<1x8x128xbf16> to vector<8x128xbf16>
    %347 = vector.shape_cast %343 : vector<8x128xbf16> to vector<1x8x128xbf16>
    tpu.vector_store %arg10[%344, %c0_127, %c0_128], %347 {strides = array<i32>} : memref<8x8x128xbf16, #tpu.memory_space<vmem>>, vector<1x8x128xbf16>,
    %c2_i32_129 = arith.constant 2 : i32
    %348 = arith.index_cast %c2_i32_129 : i32 to index
    %c0_130 = arith.constant 0 : index
    %c0_131 = arith.constant 0 : index
    %349 = vector.load %arg9[%348, %c0_130, %c0_131] : memref<8x8x32xbf16, #tpu.memory_space<vmem>>, vector<1x8x32xbf16>
    %350 = vector.shape_cast %349 : vector<1x8x32xbf16> to vector<8x32xbf16>
    %cst_132 = arith.constant dense<0.000000e+00> : vector<8x128xf32>
    %351 = tpu.matmul %350, %323, %cst_132 {dimension_numbers = #tpu.dot_dimension_numbers<[1], [0], [0], [1], [0, 0, 1, 1], [], []>} : vector<8x32xbf16>, vector<32x128xbf16>, vector<8x128xf32> -> vector<8x128xf32>
    %352 = vector.broadcast %325 : vector<1x128xf32> to vector<8x128xf32>
    %353 = arith.addf %351, %352 : vector<8x128xf32>
    %354 = arith.truncf %353 : vector<8x128xf32> to vector<8x128xbf16>
    %355 = arith.index_cast %c2_i32_129 : i32 to index
    %c0_133 = arith.constant 0 : index
    %c0_134 = arith.constant 0 : index
    %356 = vector.load %arg10[%355, %c0_133, %c0_134] : memref<8x8x128xbf16, #tpu.memory_space<vmem>>, vector<1x8x128xbf16>
    %357 = vector.shape_cast %356 : vector<1x8x128xbf16> to vector<8x128xbf16>
    %358 = vector.shape_cast %354 : vector<8x128xbf16> to vector<1x8x128xbf16>
    tpu.vector_store %arg10[%355, %c0_133, %c0_134], %358 {strides = array<i32>} : memref<8x8x128xbf16, #tpu.memory_space<vmem>>, vector<1x8x128xbf16>,
    %c3_i32_135 = arith.constant 3 : i32
    %359 = arith.index_cast %c3_i32_135 : i32 to index
    %c0_136 = arith.constant 0 : index
    %c0_137 = arith.constant 0 : index
    %360 = vector.load %arg9[%359, %c0_136, %c0_137] : memref<8x8x32xbf16, #tpu.memory_space<vmem>>, vector<1x8x32xbf16>
    %361 = vector.shape_cast %360 : vector<1x8x32xbf16> to vector<8x32xbf16>
    %cst_138 = arith.constant dense<0.000000e+00> : vector<8x128xf32>
    %362 = tpu.matmul %361, %323, %cst_138 {dimension_numbers = #tpu.dot_dimension_numbers<[1], [0], [0], [1], [0, 0, 1, 1], [], []>} : vector<8x32xbf16>, vector<32x128xbf16>, vector<8x128xf32> -> vector<8x128xf32>
    %363 = vector.broadcast %325 : vector<1x128xf32> to vector<8x128xf32>
    %364 = arith.addf %362, %363 : vector<8x128xf32>
    %365 = arith.truncf %364 : vector<8x128xf32> to vector<8x128xbf16>
    %366 = arith.index_cast %c3_i32_135 : i32 to index
    %c0_139 = arith.constant 0 : index
    %c0_140 = arith.constant 0 : index
    %367 = vector.load %arg10[%366, %c0_139, %c0_140] : memref<8x8x128xbf16, #tpu.memory_space<vmem>>, vector<1x8x128xbf16>
    %368 = vector.shape_cast %367 : vector<1x8x128xbf16> to vector<8x128xbf16>
    %369 = vector.shape_cast %365 : vector<8x128xbf16> to vector<1x8x128xbf16>
    tpu.vector_store %arg10[%366, %c0_139, %c0_140], %369 {strides = array<i32>} : memref<8x8x128xbf16, #tpu.memory_space<vmem>>, vector<1x8x128xbf16>,
    %c4_i32_141 = arith.constant 4 : i32
    %370 = arith.index_cast %c4_i32_141 : i32 to index
    %c0_142 = arith.constant 0 : index
    %c0_143 = arith.constant 0 : index
    %371 = vector.load %arg9[%370, %c0_142, %c0_143] : memref<8x8x32xbf16, #tpu.memory_space<vmem>>, vector<1x8x32xbf16>
    %372 = vector.shape_cast %371 : vector<1x8x32xbf16> to vector<8x32xbf16>
    %cst_144 = arith.constant dense<0.000000e+00> : vector<8x128xf32>
    %373 = tpu.matmul %372, %323, %cst_144 {dimension_numbers = #tpu.dot_dimension_numbers<[1], [0], [0], [1], [0, 0, 1, 1], [], []>} : vector<8x32xbf16>, vector<32x128xbf16>, vector<8x128xf32> -> vector<8x128xf32>
    %374 = vector.broadcast %325 : vector<1x128xf32> to vector<8x128xf32>
    %375 = arith.addf %373, %374 : vector<8x128xf32>
    %376 = arith.truncf %375 : vector<8x128xf32> to vector<8x128xbf16>
    %377 = arith.index_cast %c4_i32_141 : i32 to index
    %c0_145 = arith.constant 0 : index
    %c0_146 = arith.constant 0 : index
    %378 = vector.load %arg10[%377, %c0_145, %c0_146] : memref<8x8x128xbf16, #tpu.memory_space<vmem>>, vector<1x8x128xbf16>
    %379 = vector.shape_cast %378 : vector<1x8x128xbf16> to vector<8x128xbf16>
    %380 = vector.shape_cast %376 : vector<8x128xbf16> to vector<1x8x128xbf16>
    tpu.vector_store %arg10[%377, %c0_145, %c0_146], %380 {strides = array<i32>} : memref<8x8x128xbf16, #tpu.memory_space<vmem>>, vector<1x8x128xbf16>,
    %c5_i32_147 = arith.constant 5 : i32
    %381 = arith.index_cast %c5_i32_147 : i32 to index
    %c0_148 = arith.constant 0 : index
    %c0_149 = arith.constant 0 : index
    %382 = vector.load %arg9[%381, %c0_148, %c0_149] : memref<8x8x32xbf16, #tpu.memory_space<vmem>>, vector<1x8x32xbf16>
    %383 = vector.shape_cast %382 : vector<1x8x32xbf16> to vector<8x32xbf16>
    %cst_150 = arith.constant dense<0.000000e+00> : vector<8x128xf32>
    %384 = tpu.matmul %383, %323, %cst_150 {dimension_numbers = #tpu.dot_dimension_numbers<[1], [0], [0], [1], [0, 0, 1, 1], [], []>} : vector<8x32xbf16>, vector<32x128xbf16>, vector<8x128xf32> -> vector<8x128xf32>
    %385 = vector.broadcast %325 : vector<1x128xf32> to vector<8x128xf32>
    %386 = arith.addf %384, %385 : vector<8x128xf32>
    %387 = arith.truncf %386 : vector<8x128xf32> to vector<8x128xbf16>
    %388 = arith.index_cast %c5_i32_147 : i32 to index
    %c0_151 = arith.constant 0 : index
    %c0_152 = arith.constant 0 : index
    %389 = vector.load %arg10[%388, %c0_151, %c0_152] : memref<8x8x128xbf16, #tpu.memory_space<vmem>>, vector<1x8x128xbf16>
    %390 = vector.shape_cast %389 : vector<1x8x128xbf16> to vector<8x128xbf16>
    %391 = vector.shape_cast %387 : vector<8x128xbf16> to vector<1x8x128xbf16>
    tpu.vector_store %arg10[%388, %c0_151, %c0_152], %391 {strides = array<i32>} : memref<8x8x128xbf16, #tpu.memory_space<vmem>>, vector<1x8x128xbf16>,
    %c6_i32_153 = arith.constant 6 : i32
    %392 = arith.index_cast %c6_i32_153 : i32 to index
    %c0_154 = arith.constant 0 : index
    %c0_155 = arith.constant 0 : index
    %393 = vector.load %arg9[%392, %c0_154, %c0_155] : memref<8x8x32xbf16, #tpu.memory_space<vmem>>, vector<1x8x32xbf16>
    %394 = vector.shape_cast %393 : vector<1x8x32xbf16> to vector<8x32xbf16>
    %cst_156 = arith.constant dense<0.000000e+00> : vector<8x128xf32>
    %395 = tpu.matmul %394, %323, %cst_156 {dimension_numbers = #tpu.dot_dimension_numbers<[1], [0], [0], [1], [0, 0, 1, 1], [], []>} : vector<8x32xbf16>, vector<32x128xbf16>, vector<8x128xf32> -> vector<8x128xf32>
    %396 = vector.broadcast %325 : vector<1x128xf32> to vector<8x128xf32>
    %397 = arith.addf %395, %396 : vector<8x128xf32>
    %398 = arith.truncf %397 : vector<8x128xf32> to vector<8x128xbf16>
    %399 = arith.index_cast %c6_i32_153 : i32 to index
    %c0_157 = arith.constant 0 : index
    %c0_158 = arith.constant 0 : index
    %400 = vector.load %arg10[%399, %c0_157, %c0_158] : memref<8x8x128xbf16, #tpu.memory_space<vmem>>, vector<1x8x128xbf16>
    %401 = vector.shape_cast %400 : vector<1x8x128xbf16> to vector<8x128xbf16>
    %402 = vector.shape_cast %398 : vector<8x128xbf16> to vector<1x8x128xbf16>
    tpu.vector_store %arg10[%399, %c0_157, %c0_158], %402 {strides = array<i32>} : memref<8x8x128xbf16, #tpu.memory_space<vmem>>, vector<1x8x128xbf16>,
    %c7_i32_159 = arith.constant 7 : i32
    %403 = arith.index_cast %c7_i32_159 : i32 to index
    %c0_160 = arith.constant 0 : index
    %c0_161 = arith.constant 0 : index
    %404 = vector.load %arg9[%403, %c0_160, %c0_161] : memref<8x8x32xbf16, #tpu.memory_space<vmem>>, vector<1x8x32xbf16>
    %405 = vector.shape_cast %404 : vector<1x8x32xbf16> to vector<8x32xbf16>
    %cst_162 = arith.constant dense<0.000000e+00> : vector<8x128xf32>
    %406 = tpu.matmul %405, %323, %cst_162 {dimension_numbers = #tpu.dot_dimension_numbers<[1], [0], [0], [1], [0, 0, 1, 1], [], []>} : vector<8x32xbf16>, vector<32x128xbf16>, vector<8x128xf32> -> vector<8x128xf32>
    %407 = vector.broadcast %325 : vector<1x128xf32> to vector<8x128xf32>
    %408 = arith.addf %406, %407 : vector<8x128xf32>
    %409 = arith.truncf %408 : vector<8x128xf32> to vector<8x128xbf16>
    %410 = arith.index_cast %c7_i32_159 : i32 to index
    %c0_163 = arith.constant 0 : index
    %c0_164 = arith.constant 0 : index
    %411 = vector.load %arg10[%410, %c0_163, %c0_164] : memref<8x8x128xbf16, #tpu.memory_space<vmem>>, vector<1x8x128xbf16>
    %412 = vector.shape_cast %411 : vector<1x8x128xbf16> to vector<8x128xbf16>
    %413 = vector.shape_cast %409 : vector<8x128xbf16> to vector<1x8x128xbf16>
    tpu.vector_store %arg10[%410, %c0_163, %c0_164], %413 {strides = array<i32>} : memref<8x8x128xbf16, #tpu.memory_space<vmem>>, vector<1x8x128xbf16>,
    %c8_i32_165 = arith.constant 8 : i32
    %cst_166 = arith.constant 0.000000e+00 : f32
    %414 = vector.broadcast %cst_166 : f32 to vector<8x32xf32>
    %cst_167 = arith.constant 0.000000e+00 : f32
    %415 = vector.broadcast %cst_167 : f32 to vector<8x32xf32>
    %c0_i32_168 = arith.constant 0 : i32
    %416 = arith.truncf %414 : vector<8x32xf32> to vector<8x32xbf16>
    %cst_169 = arith.constant dense<0.000000e+00> : vector<8x128xf32>
    %417 = tpu.matmul %416, %324, %cst_169 {dimension_numbers = #tpu.dot_dimension_numbers<[1], [0], [0], [1], [0, 0, 1, 1], [], []>} : vector<8x32xbf16>, vector<32x128xbf16>, vector<8x128xf32> -> vector<8x128xf32>
    %418 = arith.index_cast %c0_i32_168 : i32 to index
    %c0_170 = arith.constant 0 : index
    %c0_171 = arith.constant 0 : index
    %419 = vector.load %arg10[%418, %c0_170, %c0_171] : memref<8x8x128xbf16, #tpu.memory_space<vmem>>, vector<1x8x128xbf16>
    %420 = vector.shape_cast %419 : vector<1x8x128xbf16> to vector<8x128xbf16>
    %421 = arith.extf %420 : vector<8x128xbf16> to vector<8x128xf32>
    %422 = arith.addf %417, %421 : vector<8x128xf32>
    %423 = math.tanh %422 : vector<8x128xf32>
    %cst_172 = arith.constant 1.000000e+00 : f32
    %424 = vector.broadcast %cst_172 : f32 to vector<8x128xf32>
    %425 = arith.addf %423, %424 : vector<8x128xf32>
    %cst_173 = arith.constant 5.000000e-01 : f32
    %426 = vector.broadcast %cst_173 : f32 to vector<8x128xf32>
    %427 = arith.mulf %426, %425 : vector<8x128xf32>
    %428 = arith.select %5, %423, %427 : vector<8x128xi1>, vector<8x128xf32>
    %429 = vector.extract_strided_slice %428 {offsets = [0, 0], sizes = [8, 32], strides = [1, 1]} : vector<8x128xf32> to vector<8x32xf32>
    %430 = vector.extract_strided_slice %428 {offsets = [0, 32], sizes = [8, 32], strides = [1, 1]} : vector<8x128xf32> to vector<8x32xf32>
    %431 = vector.extract_strided_slice %428 {offsets = [0, 64], sizes = [8, 32], strides = [1, 1]} : vector<8x128xf32> to vector<8x32xf32>
    %432 = vector.extract_strided_slice %428 {offsets = [0, 96], sizes = [8, 32], strides = [1, 1]} : vector<8x128xf32> to vector<8x32xf32>
    %433 = arith.mulf %430, %415 : vector<8x32xf32>
    %434 = arith.mulf %429, %431 : vector<8x32xf32>
    %435 = arith.addf %433, %434 : vector<8x32xf32>
    %436 = math.tanh %435 : vector<8x32xf32>
    %437 = arith.mulf %432, %436 : vector<8x32xf32>
    %c1_i32_174 = arith.constant 1 : i32
    %438 = arith.truncf %437 : vector<8x32xf32> to vector<8x32xbf16>
    %cst_175 = arith.constant dense<0.000000e+00> : vector<8x128xf32>
    %439 = tpu.matmul %438, %324, %cst_175 {dimension_numbers = #tpu.dot_dimension_numbers<[1], [0], [0], [1], [0, 0, 1, 1], [], []>} : vector<8x32xbf16>, vector<32x128xbf16>, vector<8x128xf32> -> vector<8x128xf32>
    %440 = arith.index_cast %c1_i32_174 : i32 to index
    %c0_176 = arith.constant 0 : index
    %c0_177 = arith.constant 0 : index
    %441 = vector.load %arg10[%440, %c0_176, %c0_177] : memref<8x8x128xbf16, #tpu.memory_space<vmem>>, vector<1x8x128xbf16>
    %442 = vector.shape_cast %441 : vector<1x8x128xbf16> to vector<8x128xbf16>
    %443 = arith.extf %442 : vector<8x128xbf16> to vector<8x128xf32>
    %444 = arith.addf %439, %443 : vector<8x128xf32>
    %445 = math.tanh %444 : vector<8x128xf32>
    %cst_178 = arith.constant 1.000000e+00 : f32
    %446 = vector.broadcast %cst_178 : f32 to vector<8x128xf32>
    %447 = arith.addf %445, %446 : vector<8x128xf32>
    %cst_179 = arith.constant 5.000000e-01 : f32
    %448 = vector.broadcast %cst_179 : f32 to vector<8x128xf32>
    %449 = arith.mulf %448, %447 : vector<8x128xf32>
    %450 = arith.select %5, %445, %449 : vector<8x128xi1>, vector<8x128xf32>
    %451 = vector.extract_strided_slice %450 {offsets = [0, 0], sizes = [8, 32], strides = [1, 1]} : vector<8x128xf32> to vector<8x32xf32>
    %452 = vector.extract_strided_slice %450 {offsets = [0, 32], sizes = [8, 32], strides = [1, 1]} : vector<8x128xf32> to vector<8x32xf32>
    %453 = vector.extract_strided_slice %450 {offsets = [0, 64], sizes = [8, 32], strides = [1, 1]} : vector<8x128xf32> to vector<8x32xf32>
    %454 = vector.extract_strided_slice %450 {offsets = [0, 96], sizes = [8, 32], strides = [1, 1]} : vector<8x128xf32> to vector<8x32xf32>
    %455 = arith.mulf %452, %435 : vector<8x32xf32>
    %456 = arith.mulf %451, %453 : vector<8x32xf32>
    %457 = arith.addf %455, %456 : vector<8x32xf32>
    %458 = math.tanh %457 : vector<8x32xf32>
    %459 = arith.mulf %454, %458 : vector<8x32xf32>
    %c2_i32_180 = arith.constant 2 : i32
    %460 = arith.truncf %459 : vector<8x32xf32> to vector<8x32xbf16>
    %cst_181 = arith.constant dense<0.000000e+00> : vector<8x128xf32>
    %461 = tpu.matmul %460, %324, %cst_181 {dimension_numbers = #tpu.dot_dimension_numbers<[1], [0], [0], [1], [0, 0, 1, 1], [], []>} : vector<8x32xbf16>, vector<32x128xbf16>, vector<8x128xf32> -> vector<8x128xf32>
    %462 = arith.index_cast %c2_i32_180 : i32 to index
    %c0_182 = arith.constant 0 : index
    %c0_183 = arith.constant 0 : index
    %463 = vector.load %arg10[%462, %c0_182, %c0_183] : memref<8x8x128xbf16, #tpu.memory_space<vmem>>, vector<1x8x128xbf16>
    %464 = vector.shape_cast %463 : vector<1x8x128xbf16> to vector<8x128xbf16>
    %465 = arith.extf %464 : vector<8x128xbf16> to vector<8x128xf32>
    %466 = arith.addf %461, %465 : vector<8x128xf32>
    %467 = math.tanh %466 : vector<8x128xf32>
    %cst_184 = arith.constant 1.000000e+00 : f32
    %468 = vector.broadcast %cst_184 : f32 to vector<8x128xf32>
    %469 = arith.addf %467, %468 : vector<8x128xf32>
    %cst_185 = arith.constant 5.000000e-01 : f32
    %470 = vector.broadcast %cst_185 : f32 to vector<8x128xf32>
    %471 = arith.mulf %470, %469 : vector<8x128xf32>
    %472 = arith.select %5, %467, %471 : vector<8x128xi1>, vector<8x128xf32>
    %473 = vector.extract_strided_slice %472 {offsets = [0, 0], sizes = [8, 32], strides = [1, 1]} : vector<8x128xf32> to vector<8x32xf32>
    %474 = vector.extract_strided_slice %472 {offsets = [0, 32], sizes = [8, 32], strides = [1, 1]} : vector<8x128xf32> to vector<8x32xf32>
    %475 = vector.extract_strided_slice %472 {offsets = [0, 64], sizes = [8, 32], strides = [1, 1]} : vector<8x128xf32> to vector<8x32xf32>
    %476 = vector.extract_strided_slice %472 {offsets = [0, 96], sizes = [8, 32], strides = [1, 1]} : vector<8x128xf32> to vector<8x32xf32>
    %477 = arith.mulf %474, %457 : vector<8x32xf32>
    %478 = arith.mulf %473, %475 : vector<8x32xf32>
    %479 = arith.addf %477, %478 : vector<8x32xf32>
    %480 = math.tanh %479 : vector<8x32xf32>
    %481 = arith.mulf %476, %480 : vector<8x32xf32>
    %c3_i32_186 = arith.constant 3 : i32
    %482 = arith.truncf %481 : vector<8x32xf32> to vector<8x32xbf16>
    %cst_187 = arith.constant dense<0.000000e+00> : vector<8x128xf32>
    %483 = tpu.matmul %482, %324, %cst_187 {dimension_numbers = #tpu.dot_dimension_numbers<[1], [0], [0], [1], [0, 0, 1, 1], [], []>} : vector<8x32xbf16>, vector<32x128xbf16>, vector<8x128xf32> -> vector<8x128xf32>
    %484 = arith.index_cast %c3_i32_186 : i32 to index
    %c0_188 = arith.constant 0 : index
    %c0_189 = arith.constant 0 : index
    %485 = vector.load %arg10[%484, %c0_188, %c0_189] : memref<8x8x128xbf16, #tpu.memory_space<vmem>>, vector<1x8x128xbf16>
    %486 = vector.shape_cast %485 : vector<1x8x128xbf16> to vector<8x128xbf16>
    %487 = arith.extf %486 : vector<8x128xbf16> to vector<8x128xf32>
    %488 = arith.addf %483, %487 : vector<8x128xf32>
    %489 = math.tanh %488 : vector<8x128xf32>
    %cst_190 = arith.constant 1.000000e+00 : f32
    %490 = vector.broadcast %cst_190 : f32 to vector<8x128xf32>
    %491 = arith.addf %489, %490 : vector<8x128xf32>
    %cst_191 = arith.constant 5.000000e-01 : f32
    %492 = vector.broadcast %cst_191 : f32 to vector<8x128xf32>
    %493 = arith.mulf %492, %491 : vector<8x128xf32>
    %494 = arith.select %5, %489, %493 : vector<8x128xi1>, vector<8x128xf32>
    %495 = vector.extract_strided_slice %494 {offsets = [0, 0], sizes = [8, 32], strides = [1, 1]} : vector<8x128xf32> to vector<8x32xf32>
    %496 = vector.extract_strided_slice %494 {offsets = [0, 32], sizes = [8, 32], strides = [1, 1]} : vector<8x128xf32> to vector<8x32xf32>
    %497 = vector.extract_strided_slice %494 {offsets = [0, 64], sizes = [8, 32], strides = [1, 1]} : vector<8x128xf32> to vector<8x32xf32>
    %498 = vector.extract_strided_slice %494 {offsets = [0, 96], sizes = [8, 32], strides = [1, 1]} : vector<8x128xf32> to vector<8x32xf32>
    %499 = arith.mulf %496, %479 : vector<8x32xf32>
    %500 = arith.mulf %495, %497 : vector<8x32xf32>
    %501 = arith.addf %499, %500 : vector<8x32xf32>
    %502 = math.tanh %501 : vector<8x32xf32>
    %503 = arith.mulf %498, %502 : vector<8x32xf32>
    %c4_i32_192 = arith.constant 4 : i32
    %504 = arith.truncf %503 : vector<8x32xf32> to vector<8x32xbf16>
    %cst_193 = arith.constant dense<0.000000e+00> : vector<8x128xf32>
    %505 = tpu.matmul %504, %324, %cst_193 {dimension_numbers = #tpu.dot_dimension_numbers<[1], [0], [0], [1], [0, 0, 1, 1], [], []>} : vector<8x32xbf16>, vector<32x128xbf16>, vector<8x128xf32> -> vector<8x128xf32>
    %506 = arith.index_cast %c4_i32_192 : i32 to index
    %c0_194 = arith.constant 0 : index
    %c0_195 = arith.constant 0 : index
    %507 = vector.load %arg10[%506, %c0_194, %c0_195] : memref<8x8x128xbf16, #tpu.memory_space<vmem>>, vector<1x8x128xbf16>
    %508 = vector.shape_cast %507 : vector<1x8x128xbf16> to vector<8x128xbf16>
    %509 = arith.extf %508 : vector<8x128xbf16> to vector<8x128xf32>
    %510 = arith.addf %505, %509 : vector<8x128xf32>
    %511 = math.tanh %510 : vector<8x128xf32>
    %cst_196 = arith.constant 1.000000e+00 : f32
    %512 = vector.broadcast %cst_196 : f32 to vector<8x128xf32>
    %513 = arith.addf %511, %512 : vector<8x128xf32>
    %cst_197 = arith.constant 5.000000e-01 : f32
    %514 = vector.broadcast %cst_197 : f32 to vector<8x128xf32>
    %515 = arith.mulf %514, %513 : vector<8x128xf32>
    %516 = arith.select %5, %511, %515 : vector<8x128xi1>, vector<8x128xf32>
    %517 = vector.extract_strided_slice %516 {offsets = [0, 0], sizes = [8, 32], strides = [1, 1]} : vector<8x128xf32> to vector<8x32xf32>
    %518 = vector.extract_strided_slice %516 {offsets = [0, 32], sizes = [8, 32], strides = [1, 1]} : vector<8x128xf32> to vector<8x32xf32>
    %519 = vector.extract_strided_slice %516 {offsets = [0, 64], sizes = [8, 32], strides = [1, 1]} : vector<8x128xf32> to vector<8x32xf32>
    %520 = vector.extract_strided_slice %516 {offsets = [0, 96], sizes = [8, 32], strides = [1, 1]} : vector<8x128xf32> to vector<8x32xf32>
    %521 = arith.mulf %518, %501 : vector<8x32xf32>
    %522 = arith.mulf %517, %519 : vector<8x32xf32>
    %523 = arith.addf %521, %522 : vector<8x32xf32>
    %524 = math.tanh %523 : vector<8x32xf32>
    %525 = arith.mulf %520, %524 : vector<8x32xf32>
    %c5_i32_198 = arith.constant 5 : i32
    %526 = arith.truncf %525 : vector<8x32xf32> to vector<8x32xbf16>
    %cst_199 = arith.constant dense<0.000000e+00> : vector<8x128xf32>
    %527 = tpu.matmul %526, %324, %cst_199 {dimension_numbers = #tpu.dot_dimension_numbers<[1], [0], [0], [1], [0, 0, 1, 1], [], []>} : vector<8x32xbf16>, vector<32x128xbf16>, vector<8x128xf32> -> vector<8x128xf32>
    %528 = arith.index_cast %c5_i32_198 : i32 to index
    %c0_200 = arith.constant 0 : index
    %c0_201 = arith.constant 0 : index
    %529 = vector.load %arg10[%528, %c0_200, %c0_201] : memref<8x8x128xbf16, #tpu.memory_space<vmem>>, vector<1x8x128xbf16>
    %530 = vector.shape_cast %529 : vector<1x8x128xbf16> to vector<8x128xbf16>
    %531 = arith.extf %530 : vector<8x128xbf16> to vector<8x128xf32>
    %532 = arith.addf %527, %531 : vector<8x128xf32>
    %533 = math.tanh %532 : vector<8x128xf32>
    %cst_202 = arith.constant 1.000000e+00 : f32
    %534 = vector.broadcast %cst_202 : f32 to vector<8x128xf32>
    %535 = arith.addf %533, %534 : vector<8x128xf32>
    %cst_203 = arith.constant 5.000000e-01 : f32
    %536 = vector.broadcast %cst_203 : f32 to vector<8x128xf32>
    %537 = arith.mulf %536, %535 : vector<8x128xf32>
    %538 = arith.select %5, %533, %537 : vector<8x128xi1>, vector<8x128xf32>
    %539 = vector.extract_strided_slice %538 {offsets = [0, 0], sizes = [8, 32], strides = [1, 1]} : vector<8x128xf32> to vector<8x32xf32>
    %540 = vector.extract_strided_slice %538 {offsets = [0, 32], sizes = [8, 32], strides = [1, 1]} : vector<8x128xf32> to vector<8x32xf32>
    %541 = vector.extract_strided_slice %538 {offsets = [0, 64], sizes = [8, 32], strides = [1, 1]} : vector<8x128xf32> to vector<8x32xf32>
    %542 = vector.extract_strided_slice %538 {offsets = [0, 96], sizes = [8, 32], strides = [1, 1]} : vector<8x128xf32> to vector<8x32xf32>
    %543 = arith.mulf %540, %523 : vector<8x32xf32>
    %544 = arith.mulf %539, %541 : vector<8x32xf32>
    %545 = arith.addf %543, %544 : vector<8x32xf32>
    %546 = math.tanh %545 : vector<8x32xf32>
    %547 = arith.mulf %542, %546 : vector<8x32xf32>
    %c6_i32_204 = arith.constant 6 : i32
    %548 = arith.truncf %547 : vector<8x32xf32> to vector<8x32xbf16>
    %cst_205 = arith.constant dense<0.000000e+00> : vector<8x128xf32>
    %549 = tpu.matmul %548, %324, %cst_205 {dimension_numbers = #tpu.dot_dimension_numbers<[1], [0], [0], [1], [0, 0, 1, 1], [], []>} : vector<8x32xbf16>, vector<32x128xbf16>, vector<8x128xf32> -> vector<8x128xf32>
    %550 = arith.index_cast %c6_i32_204 : i32 to index
    %c0_206 = arith.constant 0 : index
    %c0_207 = arith.constant 0 : index
    %551 = vector.load %arg10[%550, %c0_206, %c0_207] : memref<8x8x128xbf16, #tpu.memory_space<vmem>>, vector<1x8x128xbf16>
    %552 = vector.shape_cast %551 : vector<1x8x128xbf16> to vector<8x128xbf16>
    %553 = arith.extf %552 : vector<8x128xbf16> to vector<8x128xf32>
    %554 = arith.addf %549, %553 : vector<8x128xf32>
    %555 = math.tanh %554 : vector<8x128xf32>
    %cst_208 = arith.constant 1.000000e+00 : f32
    %556 = vector.broadcast %cst_208 : f32 to vector<8x128xf32>
    %557 = arith.addf %555, %556 : vector<8x128xf32>
    %cst_209 = arith.constant 5.000000e-01 : f32
    %558 = vector.broadcast %cst_209 : f32 to vector<8x128xf32>
    %559 = arith.mulf %558, %557 : vector<8x128xf32>
    %560 = arith.select %5, %555, %559 : vector<8x128xi1>, vector<8x128xf32>
    %561 = vector.extract_strided_slice %560 {offsets = [0, 0], sizes = [8, 32], strides = [1, 1]} : vector<8x128xf32> to vector<8x32xf32>
    %562 = vector.extract_strided_slice %560 {offsets = [0, 32], sizes = [8, 32], strides = [1, 1]} : vector<8x128xf32> to vector<8x32xf32>
    %563 = vector.extract_strided_slice %560 {offsets = [0, 64], sizes = [8, 32], strides = [1, 1]} : vector<8x128xf32> to vector<8x32xf32>
    %564 = vector.extract_strided_slice %560 {offsets = [0, 96], sizes = [8, 32], strides = [1, 1]} : vector<8x128xf32> to vector<8x32xf32>
    %565 = arith.mulf %562, %545 : vector<8x32xf32>
    %566 = arith.mulf %561, %563 : vector<8x32xf32>
    %567 = arith.addf %565, %566 : vector<8x32xf32>
    %568 = math.tanh %567 : vector<8x32xf32>
    %569 = arith.mulf %564, %568 : vector<8x32xf32>
    %c7_i32_210 = arith.constant 7 : i32
    %570 = arith.truncf %569 : vector<8x32xf32> to vector<8x32xbf16>
    %cst_211 = arith.constant dense<0.000000e+00> : vector<8x128xf32>
    %571 = tpu.matmul %570, %324, %cst_211 {dimension_numbers = #tpu.dot_dimension_numbers<[1], [0], [0], [1], [0, 0, 1, 1], [], []>} : vector<8x32xbf16>, vector<32x128xbf16>, vector<8x128xf32> -> vector<8x128xf32>
    %572 = arith.index_cast %c7_i32_210 : i32 to index
    %c0_212 = arith.constant 0 : index
    %c0_213 = arith.constant 0 : index
    %573 = vector.load %arg10[%572, %c0_212, %c0_213] : memref<8x8x128xbf16, #tpu.memory_space<vmem>>, vector<1x8x128xbf16>
    %574 = vector.shape_cast %573 : vector<1x8x128xbf16> to vector<8x128xbf16>
    %575 = arith.extf %574 : vector<8x128xbf16> to vector<8x128xf32>
    %576 = arith.addf %571, %575 : vector<8x128xf32>
    %577 = math.tanh %576 : vector<8x128xf32>
    %cst_214 = arith.constant 1.000000e+00 : f32
    %578 = vector.broadcast %cst_214 : f32 to vector<8x128xf32>
    %579 = arith.addf %577, %578 : vector<8x128xf32>
    %cst_215 = arith.constant 5.000000e-01 : f32
    %580 = vector.broadcast %cst_215 : f32 to vector<8x128xf32>
    %581 = arith.mulf %580, %579 : vector<8x128xf32>
    %582 = arith.select %5, %577, %581 : vector<8x128xi1>, vector<8x128xf32>
    %583 = vector.extract_strided_slice %582 {offsets = [0, 0], sizes = [8, 32], strides = [1, 1]} : vector<8x128xf32> to vector<8x32xf32>
    %584 = vector.extract_strided_slice %582 {offsets = [0, 32], sizes = [8, 32], strides = [1, 1]} : vector<8x128xf32> to vector<8x32xf32>
    %585 = vector.extract_strided_slice %582 {offsets = [0, 64], sizes = [8, 32], strides = [1, 1]} : vector<8x128xf32> to vector<8x32xf32>
    %586 = vector.extract_strided_slice %582 {offsets = [0, 96], sizes = [8, 32], strides = [1, 1]} : vector<8x128xf32> to vector<8x32xf32>
    %587 = arith.mulf %584, %567 : vector<8x32xf32>
    %588 = arith.mulf %583, %585 : vector<8x32xf32>
    %589 = arith.addf %587, %588 : vector<8x32xf32>
    %590 = math.tanh %589 : vector<8x32xf32>
    %591 = arith.mulf %586, %590 : vector<8x32xf32>
    %c8_i32_216 = arith.constant 8 : i32
    %592 = math.tanh %591 : vector<8x32xf32>
    %c0_217 = arith.constant 0 : index
    %c0_218 = arith.constant 0 : index
    %593 = vector.load %arg8[%c0_217, %c0_218] : memref<8x32xf32, #tpu.memory_space<vmem>>, vector<8x32xf32>
    tpu.vector_store %arg8[%c0_217, %c0_218], %592 {strides = array<i32>} : memref<8x32xf32, #tpu.memory_space<vmem>>, vector<8x32xf32>,
    return
  }
  func.func @transform_0(%arg0: i32) -> (i32, i32, i32) {
    %c0_i32 = arith.constant 0 : i32
    %c0_i32_0 = arith.constant 0 : i32
    %c0_i32_1 = arith.constant 0 : i32
    return %c0_i32, %arg0, %c0_i32_0 : i32, i32, i32
  }
  func.func @transform_1(%arg0: i32) -> (i32, i32) {
    %c0_i32 = arith.constant 0 : i32
    %c0_i32_0 = arith.constant 0 : i32
    %c0_i32_1 = arith.constant 0 : i32
    return %c0_i32, %c0_i32_0 : i32, i32
  }
  func.func @transform_2(%arg0: i32) -> (i32, i32) {
    %c0_i32 = arith.constant 0 : i32
    %c0_i32_0 = arith.constant 0 : i32
    %c0_i32_1 = arith.constant 0 : i32
    return %c0_i32, %c0_i32_0 : i32, i32
  }
  func.func @transform_3(%arg0: i32) -> (i32, i32) {
    %c0_i32 = arith.constant 0 : i32
    %c0_i32_0 = arith.constant 0 : i32
    %c0_i32_1 = arith.constant 0 : i32
    return %c0_i32, %c0_i32_0 : i32, i32
  }
  func.func @transform_4(%arg0: i32) -> (i32, i32) {
    %c0_i32 = arith.constant 0 : i32
    %c0_i32_0 = arith.constant 0 : i32
    %c0_i32_1 = arith.constant 0 : i32
    return %c0_i32, %c0_i32_0 : i32, i32
  }
  func.func @transform_5(%arg0: i32) -> (i32, i32) {
    %c0_i32 = arith.constant 0 : i32
    %c0_i32_0 = arith.constant 0 : i32
    %c0_i32_1 = arith.constant 0 : i32
    return %c0_i32, %c0_i32_0 : i32, i32
  }
  func.func @transform_6(%arg0: i32) -> (i32, i32) {
    %c0_i32 = arith.constant 0 : i32
    %c0_i32_0 = arith.constant 0 : i32
    %c0_i32_1 = arith.constant 0 : i32
    return %c0_i32, %c0_i32_0 : i32, i32
  }
  func.func @transform_7(%arg0: i32) -> (i32, i32) {
    %c0_i32 = arith.constant 0 : i32
    %c0_i32_0 = arith.constant 0 : i32
    return %arg0, %c0_i32 : i32, i32
  }
}

</mosaic_0001>

<llo_original>
// kernel: tpu_custom_call.1
$region0: #{tpu_custom_call.1}
  #allocation0 [shape = 'u32[]', space=smem, size = 0x4, offset = 0x4, fixed_abs, tag = 'smem constant byte address 0x4 - core index']
  #allocation1 [shape = 'u32[72,128]{1,0:T(1,128)}', space=vmem, size = 0x9000, scoped, tag = 'internal scratch']
  #allocation2 [shape = 'bf16[8,8,32]{2,1,0:T(8,128)(2,1)}', space=vmem, size = 0x4000, scoped, tag = 'scratch operand']
  #allocation3 [shape = 'bf16[8,8,128]{2,1,0:T(8,128)(2,1)}', space=vmem, size = 0x4000, scoped, tag = 'scratch operand']
  %s0 = inlined_call_operand.vmem [shape: bf16[8,8,4], index: 0, kind: input, shape index: {}]
  %s1 = inlined_call_operand.hbm [shape: bf16[4,128], index: 1, kind: input, shape index: {}]
  %s2 = inlined_call_operand.vmem [shape: bf16[32,128], index: 2, kind: input, shape index: {}]
  %s3 = inlined_call_operand.vmem [shape: f32[1,128], index: 3, kind: input, shape index: {}]
  %s4 = inlined_call_operand.vmem [shape: bf16[32,128], index: 4, kind: input, shape index: {}]
  %s5 = inlined_call_operand.vmem [shape: bf16[32,128], index: 5, kind: input, shape index: {}]
  %s6 = inlined_call_operand.vmem [shape: f32[1,128], index: 6, kind: input, shape index: {}]
  %s7 = inlined_call_operand.hbm [shape: f32[8,32], index: 7, kind: output, shape index: {}]
  %s8 = sld [smem:[#allocation0]]
  $region42: #{tpu_custom_call.1} parent=0
    _
  %s10 = ssub.s32 1, %s8
  %s11 = scalar_select 0, %s10, %s8
  $region1: #{tpu_custom_call.1} parent=0
    #allocation4 [shape = 'u8[1024]{0}', space=vmem, size = 0x400, scoped, tag = 'input window, operand 1, single buffered']
    #allocation5 [shape = 's32[1]{0}', space=sflag, size = 0x4, scoped, tag = 'scoped memory for tpu_custom_call.1']
    #allocation6 [shape = 's32[1]{0}', space=sflag, size = 0x4, scoped, tag = 'scoped memory for tpu_custom_call.1']
    #allocation7 [shape = 'u8[4096]{0}', space=vmem, size = 0x1000, scoped, tag = 'output window, operand 0, single buffered']
    %12 = vsyncpa [#allocation5], 0
    %13 = vsyncpa [#allocation6], 0
    // Predicated region
    $region2: #{tpu_custom_call.1} parent=1 // pred_check
      _
    $region3: #{tpu_custom_call.1} parent=1 // pred_check_branch
      %15 = sbr.rel (0) target = $region5
    $region4: #{tpu_custom_call.1} parent=1 // pred_region
      _
    $region5: #{tpu_custom_call.1} parent=1 // pred_fallthru
      _
    // Predicated region
    $region6: #{tpu_custom_call.1} parent=1 // pred_check
      _
    $region7: #{tpu_custom_call.1} parent=1 // pred_check_branch
      %17 = sbr.rel (0) target = $region9
    $region8: #{tpu_custom_call.1} parent=1 // pred_region
      %19 = vsyncadd [#allocation5], 0
      %s21 = sshll.u32 %s1, 4
      %s22 = int_to_ptr.hbm [resolvable:$true] %s21
      %s23 = sshll.u32 [#allocation4], 4
      %s24 = int_to_ptr.vmem [resolvable:$true] %s23
      %26 = dma.hbm_to_vmem [thread:$0]  %s22, 32, %s24, [#allocation5]
    $region9: #{tpu_custom_call.1} parent=1 // pred_fallthru
      _
    // Predicated region
    $region10: #{tpu_custom_call.1} parent=1 // pred_check
      _
    $region11: #{tpu_custom_call.1} parent=1 // pred_check_branch
      %28 = sbr.rel (0) target = $region13
    $region12: #{tpu_custom_call.1} parent=1 // pred_region
      _
    $region13: #{tpu_custom_call.1} parent=1 // pred_fallthru
      _
    // Predicated region
    $region14: #{tpu_custom_call.1} parent=1 // pred_check
      _
    $region15: #{tpu_custom_call.1} parent=1 // pred_check_branch
      %30 = sbr.rel (0) target = $region17
    $region16: #{tpu_custom_call.1} parent=1 // pred_region
      _
    $region17: #{tpu_custom_call.1} parent=1 // pred_fallthru
      _
    // Predicated region
    $region18: #{tpu_custom_call.1} parent=1 // pred_check
      _
    $region19: #{tpu_custom_call.1} parent=1 // pred_check_branch
      %32 = sbr.rel (0) target = $region21
    $region20: #{tpu_custom_call.1} parent=1 // pred_region
      _
    $region21: #{tpu_custom_call.1} parent=1 // pred_fallthru
      _
    // Predicated region
    $region22: #{tpu_custom_call.1} parent=1 // pred_check
      _
    $region23: #{tpu_custom_call.1} parent=1 // pred_check_branch
      %34 = sbr.rel (0) target = $region25
    $region24: #{tpu_custom_call.1} parent=1 // pred_region
      _
    $region25: #{tpu_custom_call.1} parent=1 // pred_fallthru
      _
    // Predicated region
    $region26: #{tpu_custom_call.1} parent=1 // pred_check
      _
    $region27: #{tpu_custom_call.1} parent=1 // pred_check_branch
      %36 = sbr.rel (0) target = $region29
    $region28: #{tpu_custom_call.1} parent=1 // pred_region
      _
    $region29: #{tpu_custom_call.1} parent=1 // pred_fallthru
      _
    // Predicated region
    $region30: #{tpu_custom_call.1} parent=1 // pred_check
      _
    $region31: #{tpu_custom_call.1} parent=1 // pred_check_branch
      %38 = sbr.rel (0) target = $region33
    $region32: #{tpu_custom_call.1} parent=1 // pred_region
      %40 = dma.done [#allocation5], 32
    $region33: #{tpu_custom_call.1} parent=1 // pred_fallthru
      _
    %v42 = vlaneseq
    %v43 = vand.u32 %v42, 127
    %vm44 = vcmp.ge.s32.totalorder %v43, 64
    %vm45 = vcmp.lt.s32.totalorder %v43, 96
    %vm46 = vmand %vm44, %vm45
    %v47 = vld [vmem:[#allocation4] sm:$0x3]
    %v48 = vld [vmem:[%s2] sm:$0xf]
    %v49 = vld [vmem:[%s2 + $0x4] sm:$0xf]
    %v50 = vld [vmem:[%s2 + $0x8] sm:$0xf]
    %v51 = vld [vmem:[%s2 + $0xc] sm:$0xf]
    %v52 = vld [vmem:[%s3] sm:$0x1]
    %v53 = vld [vmem:[%s0] sm:$0xf]
    %v55 = vperm.slane %v52, 0
    %vm57 = vcmask 31744
    %v59 = vsel %vm57, %v53, 0
    %vm61 = vcmask 1041408
    %v63 = vsel %vm61, %v47, 0
    %65 = vmatpush.bf16.msra.mxu0 0
    %66 = vmatpush.bf16.msra.mxu0 0
    %67 = vmatpush.bf16.msra.mxu0 0
    %68 = vmatpush.bf16.msra.mxu0 0
    %69 = vmatpush.bf16.msra.mxu0 0
    %70 = vmatpush.bf16.msra.mxu0 0
    %71 = vmatpush.bf16.msra.mxu0 0
    %72 = vmatpush.bf16.msra.mxu0 %v63
    %73 = vmatmul.bf16.gmra.mxu0 %v59
    %v74 = vpop.f32.mrf.mxu0
    %v75 = vadd.f32 %v55, %v74
    %v76 = vpop.f32.mrf.mxu0
    %77 = vdwg.mxu0
    %v78 = vpack.c.bf16 %v75, %v75
    %79 = vst [vmem:[#allocation3] sm:$0xf] %v78
    %s80 = scalar_lea.vmem %s0, 4
    %v81 = vld [vmem:[%s80] sm:$0xf]
    %v83 = vsel %vm57, %v81, 0
    %85 = vmatpush.bf16.msra.mxu0 0
    %86 = vmatpush.bf16.msra.mxu0 0
    %87 = vmatpush.bf16.msra.mxu0 0
    %88 = vmatpush.bf16.msra.mxu0 0
    %89 = vmatpush.bf16.msra.mxu0 0
    %90 = vmatpush.bf16.msra.mxu0 0
    %91 = vmatpush.bf16.msra.mxu0 0
    %92 = vmatpush.bf16.msra.mxu0 %v63
    %93 = vmatmul.bf16.gmra.mxu0 %v83
    %v94 = vpop.f32.mrf.mxu0
    %v95 = vadd.f32 %v55, %v94
    %v96 = vpop.f32.mrf.mxu0
    %97 = vdwg.mxu0
    %v98 = vpack.c.bf16 %v95, %v95
    %s99 = scalar_lea.vmem [#allocation3], 4
    %100 = vst [vmem:[%s99] sm:$0xf] %v98
    %s101 = scalar_lea.vmem %s0, 8
    %v102 = vld [vmem:[%s101] sm:$0xf]
    %v104 = vsel %vm57, %v102, 0
    %106 = vmatpush.bf16.msra.mxu0 0
    %107 = vmatpush.bf16.msra.mxu0 0
    %108 = vmatpush.bf16.msra.mxu0 0
    %109 = vmatpush.bf16.msra.mxu0 0
    %110 = vmatpush.bf16.msra.mxu0 0
    %111 = vmatpush.bf16.msra.mxu0 0
    %112 = vmatpush.bf16.msra.mxu0 0
    %113 = vmatpush.bf16.msra.mxu0 %v63
    %114 = vmatmul.bf16.gmra.mxu0 %v104
    %v115 = vpop.f32.mrf.mxu0
    %v116 = vadd.f32 %v55, %v115
    %v117 = vpop.f32.mrf.mxu0
    %118 = vdwg.mxu0
    %v119 = vpack.c.bf16 %v116, %v116
    %s120 = scalar_lea.vmem [#allocation3], 8
    %121 = vst [vmem:[%s120] sm:$0xf] %v119
    %s122 = scalar_lea.vmem %s0, 12
    %v123 = vld [vmem:[%s122] sm:$0xf]
    %v125 = vsel %vm57, %v123, 0
    %127 = vmatpush.bf16.msra.mxu0 0
    %128 = vmatpush.bf16.msra.mxu0 0
    %129 = vmatpush.bf16.msra.mxu0 0
    %130 = vmatpush.bf16.msra.mxu0 0
    %131 = vmatpush.bf16.msra.mxu0 0
    %132 = vmatpush.bf16.msra.mxu0 0
    %133 = vmatpush.bf16.msra.mxu0 0
    %134 = vmatpush.bf16.msra.mxu0 %v63
    %135 = vmatmul.bf16.gmra.mxu0 %v125
    %v136 = vpop.f32.mrf.mxu0
    %v137 = vadd.f32 %v55, %v136
    %v138 = vpop.f32.mrf.mxu0
    %139 = vdwg.mxu0
    %v140 = vpack.c.bf16 %v137, %v137
    %s141 = scalar_lea.vmem [#allocation3], 12
    %142 = vst [vmem:[%s141] sm:$0xf] %v140
    %s143 = scalar_lea.vmem %s0, 16
    %v144 = vld [vmem:[%s143] sm:$0xf]
    %v146 = vsel %vm57, %v144, 0
    %148 = vmatpush.bf16.msra.mxu0 0
    %149 = vmatpush.bf16.msra.mxu0 0
    %150 = vmatpush.bf16.msra.mxu0 0
    %151 = vmatpush.bf16.msra.mxu0 0
    %152 = vmatpush.bf16.msra.mxu0 0
    %153 = vmatpush.bf16.msra.mxu0 0
    %154 = vmatpush.bf16.msra.mxu0 0
    %155 = vmatpush.bf16.msra.mxu0 %v63
    %156 = vmatmul.bf16.gmra.mxu0 %v146
    %v157 = vpop.f32.mrf.mxu0
    %v158 = vadd.f32 %v55, %v157
    %v159 = vpop.f32.mrf.mxu0
    %160 = vdwg.mxu0
    %v161 = vpack.c.bf16 %v158, %v158
    %s162 = scalar_lea.vmem [#allocation3], 16
    %163 = vst [vmem:[%s162] sm:$0xf] %v161
    %s164 = scalar_lea.vmem %s0, 20
    %v165 = vld [vmem:[%s164] sm:$0xf]
    %v167 = vsel %vm57, %v165, 0
    %169 = vmatpush.bf16.msra.mxu0 0
    %170 = vmatpush.bf16.msra.mxu0 0
    %171 = vmatpush.bf16.msra.mxu0 0
    %172 = vmatpush.bf16.msra.mxu0 0
    %173 = vmatpush.bf16.msra.mxu0 0
    %174 = vmatpush.bf16.msra.mxu0 0
    %175 = vmatpush.bf16.msra.mxu0 0
    %176 = vmatpush.bf16.msra.mxu0 %v63
    %177 = vmatmul.bf16.gmra.mxu0 %v167
    %v178 = vpop.f32.mrf.mxu0
    %v179 = vadd.f32 %v55, %v178
    %v180 = vpop.f32.mrf.mxu0
    %181 = vdwg.mxu0
    %v182 = vpack.c.bf16 %v179, %v179
    %s183 = scalar_lea.vmem [#allocation3], 20
    %184 = vst [vmem:[%s183] sm:$0xf] %v182
    %s185 = scalar_lea.vmem %s0, 24
    %v186 = vld [vmem:[%s185] sm:$0xf]
    %v188 = vsel %vm57, %v186, 0
    %190 = vmatpush.bf16.msra.mxu0 0
    %191 = vmatpush.bf16.msra.mxu0 0
    %192 = vmatpush.bf16.msra.mxu0 0
    %193 = vmatpush.bf16.msra.mxu0 0
    %194 = vmatpush.bf16.msra.mxu0 0
    %195 = vmatpush.bf16.msra.mxu0 0
    %196 = vmatpush.bf16.msra.mxu0 0
    %197 = vmatpush.bf16.msra.mxu0 %v63
    %198 = vmatmul.bf16.gmra.mxu0 %v188
    %v199 = vpop.f32.mrf.mxu0
    %v200 = vadd.f32 %v55, %v199
    %v201 = vpop.f32.mrf.mxu0
    %202 = vdwg.mxu0
    %v203 = vpack.c.bf16 %v200, %v200
    %s204 = scalar_lea.vmem [#allocation3], 24
    %205 = vst [vmem:[%s204] sm:$0xf] %v203
    %s206 = scalar_lea.vmem %s0, 28
    %v207 = vld [vmem:[%s206] sm:$0xf]
    %v209 = vsel %vm57, %v207, 0
    %211 = vmatpush.bf16.msra.mxu0 0
    %212 = vmatpush.bf16.msra.mxu0 0
    %213 = vmatpush.bf16.msra.mxu0 0
    %214 = vmatpush.bf16.msra.mxu0 0
    %215 = vmatpush.bf16.msra.mxu0 0
    %216 = vmatpush.bf16.msra.mxu0 0
    %217 = vmatpush.bf16.msra.mxu0 0
    %218 = vmatpush.bf16.msra.mxu0 %v63
    %219 = vmatmul.bf16.gmra.mxu0 %v209
    %v220 = vpop.f32.mrf.mxu0
    %v221 = vadd.f32 %v55, %v220
    %v222 = vpop.f32.mrf.mxu0
    %223 = vdwg.mxu0
    %v224 = vpack.c.bf16 %v221, %v221
    %s225 = scalar_lea.vmem [#allocation3], 28
    %226 = vst [vmem:[%s225] sm:$0xf] %v224
    %v227 = vld [vmem:[#allocation3] sm:$0xf]
    %v228 = vunpack.c.l.bf16 %v227
    %v233 = vunpack.c.l.b16 %v48
    %v234 = vunpack.c.l.b16 %v49
    %v235 = vunpack.c.l.b16 %v50
    %v236 = vunpack.c.l.b16 %v51
    %v237 = vpack.c.b16 %v234, %v233
    %v238 = vpack.c.b16 %v236, %v235
    %vm241 = vcmask 261120
    %v243 = vsel %vm241, 0, 0
    %245 = vmatpush.bf16.msra.mxu0 0
    %246 = vmatpush.bf16.msra.mxu0 0
    %247 = vmatpush.bf16.msra.mxu0 0
    %248 = vmatpush.bf16.msra.mxu0 0
    %249 = vmatpush.bf16.msra.mxu0 0
    %250 = vmatpush.bf16.msra.mxu0 0
    %251 = vmatpush.bf16.msra.mxu0 %v238
    %252 = vmatpush.bf16.msra.mxu0 %v237
    %253 = vmatmul.bf16.gmra.mxu0 %v243
    %v254 = vpop.f32.mrf.mxu0
    %v255 = vadd.f32 %v228, %v254
    %v256 = vpop.f32.mrf.mxu0
    %257 = vdwg.mxu0
    %v258 = vtanh.pop %v255
    %v259 = vadd.f32 %v258, 1.0
    %v260 = vmul.f32 %v259, 0.5
    %v261 = vsel %vm46, %v258, %v260
    %v262 = vmul.f32 %v261, 0.0
    %264 = vrot.lane.b32.xlu0 %v261, 64
    %v265 = vpop.permute.xlu0 %264
    %v267 = vmul.f32 %v261, %v265
    %269 = vrot.lane.b32.xlu0 %v267, 32
    %v270 = vpop.permute.xlu0 %269
    %v272 = vadd.f32 %v262, %v270
    %v273 = vtanh.pop %v272
    %275 = vrot.lane.b32.xlu0 %v273, 64
    %v276 = vpop.permute.xlu0 %275
    %v278 = vmul.f32 %v261, %v276
    %v279 = vtanh.pop %v278
    %v280 = vpack.c.bf16 %v279, %v279
    %282 = vrot.lane.b32.xlu0 %v280, 32
    %v283 = vpop.permute.xlu0 %282
    %vm285 = vcmask 257024
    %286 = vst.msk [vmem:[#allocation2] sm:$0xf] %vm285, %v283
    %v287 = vpack.c.bf16 %v278, %v278
    %v288 = vld [vmem:[%s99] sm:$0xf]
    %v289 = vunpack.c.l.bf16 %v288
    %291 = vrot.lane.b32.xlu0 %v287, 32
    %v292 = vpop.permute.xlu0 %291
    %v294 = vsel %vm241, %v292, 0
    %296 = vmatpush.bf16.msra.mxu0 0
    %297 = vmatpush.bf16.msra.mxu0 0
    %298 = vmatpush.bf16.msra.mxu0 0
    %299 = vmatpush.bf16.msra.mxu0 0
    %300 = vmatpush.bf16.msra.mxu0 0
    %301 = vmatpush.bf16.msra.mxu0 0
    %302 = vmatpush.bf16.msra.mxu0 %v238
    %303 = vmatpush.bf16.msra.mxu0 %v237
    %304 = vmatmul.bf16.gmra.mxu0 %v294
    %v305 = vpop.f32.mrf.mxu0
    %v306 = vadd.f32 %v289, %v305
    %v307 = vpop.f32.mrf.mxu0
    %308 = vdwg.mxu0
    %v309 = vtanh.pop %v306
    %v310 = vadd.f32 %v309, 1.0
    %v311 = vmul.f32 %v310, 0.5
    %v312 = vsel %vm46, %v309, %v311
    %v313 = vmul.f32 %v312, %v272
    %315 = vrot.lane.b32.xlu0 %v312, 64
    %v316 = vpop.permute.xlu0 %315
    %v318 = vmul.f32 %v312, %v316
    %320 = vrot.lane.b32.xlu0 %v318, 32
    %v321 = vpop.permute.xlu0 %320
    %v323 = vadd.f32 %v313, %v321
    %v324 = vtanh.pop %v323
    %326 = vrot.lane.b32.xlu0 %v324, 64
    %v327 = vpop.permute.xlu0 %326
    %v329 = vmul.f32 %v312, %v327
    %v330 = vtanh.pop %v329
    %v331 = vpack.c.bf16 %v330, %v330
    %333 = vrot.lane.b32.xlu0 %v331, 32
    %v334 = vpop.permute.xlu0 %333
    %s336 = scalar_lea.vmem [#allocation2], 4
    %337 = vst.msk [vmem:[%s336] sm:$0xf] %vm285, %v334
    %v338 = vpack.c.bf16 %v329, %v329
    %v339 = vld [vmem:[%s120] sm:$0xf]
    %v340 = vunpack.c.l.bf16 %v339
    %342 = vrot.lane.b32.xlu0 %v338, 32
    %v343 = vpop.permute.xlu0 %342
    %v345 = vsel %vm241, %v343, 0
    %347 = vmatpush.bf16.msra.mxu0 0
    %348 = vmatpush.bf16.msra.mxu0 0
    %349 = vmatpush.bf16.msra.mxu0 0
    %350 = vmatpush.bf16.msra.mxu0 0
    %351 = vmatpush.bf16.msra.mxu0 0
    %352 = vmatpush.bf16.msra.mxu0 0
    %353 = vmatpush.bf16.msra.mxu0 %v238
    %354 = vmatpush.bf16.msra.mxu0 %v237
    %355 = vmatmul.bf16.gmra.mxu0 %v345
    %v356 = vpop.f32.mrf.mxu0
    %v357 = vadd.f32 %v340, %v356
    %v358 = vpop.f32.mrf.mxu0
    %359 = vdwg.mxu0
    %v360 = vtanh.pop %v357
    %v361 = vadd.f32 %v360, 1.0
    %v362 = vmul.f32 %v361, 0.5
    %v363 = vsel %vm46, %v360, %v362
    %v364 = vmul.f32 %v363, %v323
    %366 = vrot.lane.b32.xlu0 %v363, 64
    %v367 = vpop.permute.xlu0 %366
    %v369 = vmul.f32 %v363, %v367
    %371 = vrot.lane.b32.xlu0 %v369, 32
    %v372 = vpop.permute.xlu0 %371
    %v374 = vadd.f32 %v364, %v372
    %v375 = vtanh.pop %v374
    %377 = vrot.lane.b32.xlu0 %v375, 64
    %v378 = vpop.permute.xlu0 %377
    %v380 = vmul.f32 %v363, %v378
    %v381 = vtanh.pop %v380
    %v382 = vpack.c.bf16 %v381, %v381
    %384 = vrot.lane.b32.xlu0 %v382, 32
    %v385 = vpop.permute.xlu0 %384
    %s387 = scalar_lea.vmem [#allocation2], 8
    %388 = vst.msk [vmem:[%s387] sm:$0xf] %vm285, %v385
    %v389 = vpack.c.bf16 %v380, %v380
    %v390 = vld [vmem:[%s141] sm:$0xf]
    %v391 = vunpack.c.l.bf16 %v390
    %393 = vrot.lane.b32.xlu0 %v389, 32
    %v394 = vpop.permute.xlu0 %393
    %v396 = vsel %vm241, %v394, 0
    %398 = vmatpush.bf16.msra.mxu0 0
    %399 = vmatpush.bf16.msra.mxu0 0
    %400 = vmatpush.bf16.msra.mxu0 0
    %401 = vmatpush.bf16.msra.mxu0 0
    %402 = vmatpush.bf16.msra.mxu0 0
    %403 = vmatpush.bf16.msra.mxu0 0
    %404 = vmatpush.bf16.msra.mxu0 %v238
    %405 = vmatpush.bf16.msra.mxu0 %v237
    %406 = vmatmul.bf16.gmra.mxu0 %v396
    %v407 = vpop.f32.mrf.mxu0
    %v408 = vadd.f32 %v391, %v407
    %v409 = vpop.f32.mrf.mxu0
    %410 = vdwg.mxu0
    %v411 = vtanh.pop %v408
    %v412 = vadd.f32 %v411, 1.0
    %v413 = vmul.f32 %v412, 0.5
    %v414 = vsel %vm46, %v411, %v413
    %v415 = vmul.f32 %v414, %v374
    %417 = vrot.lane.b32.xlu0 %v414, 64
    %v418 = vpop.permute.xlu0 %417
    %v420 = vmul.f32 %v414, %v418
    %422 = vrot.lane.b32.xlu0 %v420, 32
    %v423 = vpop.permute.xlu0 %422
    %v425 = vadd.f32 %v415, %v423
    %v426 = vtanh.pop %v425
    %428 = vrot.lane.b32.xlu0 %v426, 64
    %v429 = vpop.permute.xlu0 %428
    %v431 = vmul.f32 %v414, %v429
    %v432 = vtanh.pop %v431
    %v433 = vpack.c.bf16 %v432, %v432
    %435 = vrot.lane.b32.xlu0 %v433, 32
    %v436 = vpop.permute.xlu0 %435
    %s438 = scalar_lea.vmem [#allocation2], 12
    %439 = vst.msk [vmem:[%s438] sm:$0xf] %vm285, %v436
    %v440 = vpack.c.bf16 %v431, %v431
    %v441 = vld [vmem:[%s162] sm:$0xf]
    %v442 = vunpack.c.l.bf16 %v441
    %444 = vrot.lane.b32.xlu0 %v440, 32
    %v445 = vpop.permute.xlu0 %444
    %v447 = vsel %vm241, %v445, 0
    %449 = vmatpush.bf16.msra.mxu0 0
    %450 = vmatpush.bf16.msra.mxu0 0
    %451 = vmatpush.bf16.msra.mxu0 0
    %452 = vmatpush.bf16.msra.mxu0 0
    %453 = vmatpush.bf16.msra.mxu0 0
    %454 = vmatpush.bf16.msra.mxu0 0
    %455 = vmatpush.bf16.msra.mxu0 %v238
    %456 = vmatpush.bf16.msra.mxu0 %v237
    %457 = vmatmul.bf16.gmra.mxu0 %v447
    %v458 = vpop.f32.mrf.mxu0
    %v459 = vadd.f32 %v442, %v458
    %v460 = vpop.f32.mrf.mxu0
    %461 = vdwg.mxu0
    %v462 = vtanh.pop %v459
    %v463 = vadd.f32 %v462, 1.0
    %v464 = vmul.f32 %v463, 0.5
    %v465 = vsel %vm46, %v462, %v464
    %v466 = vmul.f32 %v465, %v425
    %468 = vrot.lane.b32.xlu0 %v465, 64
    %v469 = vpop.permute.xlu0 %468
    %v471 = vmul.f32 %v465, %v469
    %473 = vrot.lane.b32.xlu0 %v471, 32
    %v474 = vpop.permute.xlu0 %473
    %v476 = vadd.f32 %v466, %v474
    %v477 = vtanh.pop %v476
    %479 = vrot.lane.b32.xlu0 %v477, 64
    %v480 = vpop.permute.xlu0 %479
    %v482 = vmul.f32 %v465, %v480
    %v483 = vtanh.pop %v482
    %v484 = vpack.c.bf16 %v483, %v483
    %486 = vrot.lane.b32.xlu0 %v484, 32
    %v487 = vpop.permute.xlu0 %486
    %s489 = scalar_lea.vmem [#allocation2], 16
    %490 = vst.msk [vmem:[%s489] sm:$0xf] %vm285, %v487
    %v491 = vpack.c.bf16 %v482, %v482
    %v492 = vld [vmem:[%s183] sm:$0xf]
    %v493 = vunpack.c.l.bf16 %v492
    %495 = vrot.lane.b32.xlu0 %v491, 32
    %v496 = vpop.permute.xlu0 %495
    %v498 = vsel %vm241, %v496, 0
    %500 = vmatpush.bf16.msra.mxu0 0
    %501 = vmatpush.bf16.msra.mxu0 0
    %502 = vmatpush.bf16.msra.mxu0 0
    %503 = vmatpush.bf16.msra.mxu0 0
    %504 = vmatpush.bf16.msra.mxu0 0
    %505 = vmatpush.bf16.msra.mxu0 0
    %506 = vmatpush.bf16.msra.mxu0 %v238
    %507 = vmatpush.bf16.msra.mxu0 %v237
    %508 = vmatmul.bf16.gmra.mxu0 %v498
    %v509 = vpop.f32.mrf.mxu0
    %v510 = vadd.f32 %v493, %v509
    %v511 = vpop.f32.mrf.mxu0
    %512 = vdwg.mxu0
    %v513 = vtanh.pop %v510
    %v514 = vadd.f32 %v513, 1.0
    %v515 = vmul.f32 %v514, 0.5
    %v516 = vsel %vm46, %v513, %v515
    %v517 = vmul.f32 %v516, %v476
    %519 = vrot.lane.b32.xlu0 %v516, 64
    %v520 = vpop.permute.xlu0 %519
    %v522 = vmul.f32 %v516, %v520
    %524 = vrot.lane.b32.xlu0 %v522, 32
    %v525 = vpop.permute.xlu0 %524
    %v527 = vadd.f32 %v517, %v525
    %v528 = vtanh.pop %v527
    %530 = vrot.lane.b32.xlu0 %v528, 64
    %v531 = vpop.permute.xlu0 %530
    %v533 = vmul.f32 %v516, %v531
    %v534 = vtanh.pop %v533
    %v535 = vpack.c.bf16 %v534, %v534
    %537 = vrot.lane.b32.xlu0 %v535, 32
    %v538 = vpop.permute.xlu0 %537
    %s540 = scalar_lea.vmem [#allocation2], 20
    %541 = vst.msk [vmem:[%s540] sm:$0xf] %vm285, %v538
    %v542 = vpack.c.bf16 %v533, %v533
    %v543 = vld [vmem:[%s204] sm:$0xf]
    %v544 = vunpack.c.l.bf16 %v543
    %546 = vrot.lane.b32.xlu0 %v542, 32
    %v547 = vpop.permute.xlu0 %546
    %v549 = vsel %vm241, %v547, 0
    %551 = vmatpush.bf16.msra.mxu0 0
    %552 = vmatpush.bf16.msra.mxu0 0
    %553 = vmatpush.bf16.msra.mxu0 0
    %554 = vmatpush.bf16.msra.mxu0 0
    %555 = vmatpush.bf16.msra.mxu0 0
    %556 = vmatpush.bf16.msra.mxu0 0
    %557 = vmatpush.bf16.msra.mxu0 %v238
    %558 = vmatpush.bf16.msra.mxu0 %v237
    %559 = vmatmul.bf16.gmra.mxu0 %v549
    %v560 = vpop.f32.mrf.mxu0
    %v561 = vadd.f32 %v544, %v560
    %v562 = vpop.f32.mrf.mxu0
    %563 = vdwg.mxu0
    %v564 = vtanh.pop %v561
    %v565 = vadd.f32 %v564, 1.0
    %v566 = vmul.f32 %v565, 0.5
    %v567 = vsel %vm46, %v564, %v566
    %v568 = vmul.f32 %v567, %v527
    %570 = vrot.lane.b32.xlu0 %v567, 64
    %v571 = vpop.permute.xlu0 %570
    %v573 = vmul.f32 %v567, %v571
    %575 = vrot.lane.b32.xlu0 %v573, 32
    %v576 = vpop.permute.xlu0 %575
    %v578 = vadd.f32 %v568, %v576
    %v579 = vtanh.pop %v578
    %581 = vrot.lane.b32.xlu0 %v579, 64
    %v582 = vpop.permute.xlu0 %581
    %v584 = vmul.f32 %v567, %v582
    %v585 = vtanh.pop %v584
    %v586 = vpack.c.bf16 %v585, %v585
    %588 = vrot.lane.b32.xlu0 %v586, 32
    %v589 = vpop.permute.xlu0 %588
    %s591 = scalar_lea.vmem [#allocation2], 24
    %592 = vst.msk [vmem:[%s591] sm:$0xf] %vm285, %v589
    %v593 = vpack.c.bf16 %v584, %v584
    %v594 = vld [vmem:[%s225] sm:$0xf]
    %v595 = vunpack.c.l.bf16 %v594
    %597 = vrot.lane.b32.xlu0 %v593, 32
    %v598 = vpop.permute.xlu0 %597
    %v600 = vsel %vm241, %v598, 0
    %602 = vmatpush.bf16.msra.mxu0 0
    %603 = vmatpush.bf16.msra.mxu0 0
    %604 = vmatpush.bf16.msra.mxu0 0
    %605 = vmatpush.bf16.msra.mxu0 0
    %606 = vmatpush.bf16.msra.mxu0 0
    %607 = vmatpush.bf16.msra.mxu0 0
    %608 = vmatpush.bf16.msra.mxu0 %v238
    %609 = vmatpush.bf16.msra.mxu0 %v237
    %610 = vmatmul.bf16.gmra.mxu0 %v600
    %v611 = vpop.f32.mrf.mxu0
    %v612 = vadd.f32 %v595, %v611
    %v613 = vpop.f32.mrf.mxu0
    %614 = vdwg.mxu0
    %v615 = vtanh.pop %v612
    %v616 = vadd.f32 %v615, 1.0
    %v617 = vmul.f32 %v616, 0.5
    %v618 = vsel %vm46, %v615, %v617
    %v619 = vmul.f32 %v618, %v578
    %621 = vrot.lane.b32.xlu0 %v618, 64
    %v622 = vpop.permute.xlu0 %621
    %v624 = vmul.f32 %v618, %v622
    %626 = vrot.lane.b32.xlu0 %v624, 32
    %v627 = vpop.permute.xlu0 %626
    %v629 = vadd.f32 %v619, %v627
    %v630 = vtanh.pop %v629
    %632 = vrot.lane.b32.xlu0 %v630, 64
    %v633 = vpop.permute.xlu0 %632
    %v635 = vmul.f32 %v618, %v633
    %v636 = vtanh.pop %v635
    %v637 = vpack.c.bf16 %v636, %v636
    %639 = vrot.lane.b32.xlu0 %v637, 32
    %v640 = vpop.permute.xlu0 %639
    %s642 = scalar_lea.vmem [#allocation2], 28
    %643 = vst.msk [vmem:[%s642] sm:$0xf] %vm285, %v640
    %v644 = vld [vmem:[%s4] sm:$0xf]
    %v645 = vld [vmem:[%s4 + $0x4] sm:$0xf]
    %v646 = vld [vmem:[%s4 + $0x8] sm:$0xf]
    %v647 = vld [vmem:[%s4 + $0xc] sm:$0xf]
    %v648 = vld [vmem:[%s5] sm:$0xf]
    %v649 = vld [vmem:[%s5 + $0x4] sm:$0xf]
    %v650 = vld [vmem:[%s5 + $0x8] sm:$0xf]
    %v651 = vld [vmem:[%s5 + $0xc] sm:$0xf]
    %v652 = vld [vmem:[%s6] sm:$0x1]
    %v653 = vld [vmem:[#allocation2] sm:$0xf]
    %v655 = vperm.slane %v652, 0
    %v661 = vunpack.c.l.b16 %v644
    %v662 = vunpack.c.l.b16 %v645
    %v663 = vunpack.c.l.b16 %v646
    %v664 = vunpack.c.l.b16 %v647
    %v665 = vpack.c.b16 %v662, %v661
    %v666 = vpack.c.b16 %v664, %v663
    %v670 = vsel %vm241, %v653, 0
    %672 = vmatpush.bf16.msra.mxu0 0
    %673 = vmatpush.bf16.msra.mxu0 0
    %674 = vmatpush.bf16.msra.mxu0 0
    %675 = vmatpush.bf16.msra.mxu0 0
    %676 = vmatpush.bf16.msra.mxu0 0
    %677 = vmatpush.bf16.msra.mxu0 0
    %678 = vmatpush.bf16.msra.mxu0 %v666
    %679 = vmatpush.bf16.msra.mxu0 %v665
    %680 = vmatmul.bf16.gmra.mxu0 %v670
    %v681 = vpop.f32.mrf.mxu0
    %v682 = vadd.f32 %v655, %v681
    %v683 = vpop.f32.mrf.mxu0
    %684 = vdwg.mxu0
    %v685 = vpack.c.bf16 %v682, %v682
    %686 = vst [vmem:[#allocation3] sm:$0xf] %v685
    %v687 = vld [vmem:[%s336] sm:$0xf]
    %v689 = vsel %vm241, %v687, 0
    %691 = vmatpush.bf16.msra.mxu0 0
    %692 = vmatpush.bf16.msra.mxu0 0
    %693 = vmatpush.bf16.msra.mxu0 0
    %694 = vmatpush.bf16.msra.mxu0 0
    %695 = vmatpush.bf16.msra.mxu0 0
    %696 = vmatpush.bf16.msra.mxu0 0
    %697 = vmatpush.bf16.msra.mxu0 %v666
    %698 = vmatpush.bf16.msra.mxu0 %v665
    %699 = vmatmul.bf16.gmra.mxu0 %v689
    %v700 = vpop.f32.mrf.mxu0
    %v701 = vadd.f32 %v655, %v700
    %v702 = vpop.f32.mrf.mxu0
    %703 = vdwg.mxu0
    %v704 = vpack.c.bf16 %v701, %v701
    %705 = vst [vmem:[%s99] sm:$0xf] %v704
    %v706 = vld [vmem:[%s387] sm:$0xf]
    %v708 = vsel %vm241, %v706, 0
    %710 = vmatpush.bf16.msra.mxu0 0
    %711 = vmatpush.bf16.msra.mxu0 0
    %712 = vmatpush.bf16.msra.mxu0 0
    %713 = vmatpush.bf16.msra.mxu0 0
    %714 = vmatpush.bf16.msra.mxu0 0
    %715 = vmatpush.bf16.msra.mxu0 0
    %716 = vmatpush.bf16.msra.mxu0 %v666
    %717 = vmatpush.bf16.msra.mxu0 %v665
    %718 = vmatmul.bf16.gmra.mxu0 %v708
    %v719 = vpop.f32.mrf.mxu0
    %v720 = vadd.f32 %v655, %v719
    %v721 = vpop.f32.mrf.mxu0
    %722 = vdwg.mxu0
    %v723 = vpack.c.bf16 %v720, %v720
    %724 = vst [vmem:[%s120] sm:$0xf] %v723
    %v725 = vld [vmem:[%s438] sm:$0xf]
    %v727 = vsel %vm241, %v725, 0
    %729 = vmatpush.bf16.msra.mxu0 0
    %730 = vmatpush.bf16.msra.mxu0 0
    %731 = vmatpush.bf16.msra.mxu0 0
    %732 = vmatpush.bf16.msra.mxu0 0
    %733 = vmatpush.bf16.msra.mxu0 0
    %734 = vmatpush.bf16.msra.mxu0 0
    %735 = vmatpush.bf16.msra.mxu0 %v666
    %736 = vmatpush.bf16.msra.mxu0 %v665
    %737 = vmatmul.bf16.gmra.mxu0 %v727
    %v738 = vpop.f32.mrf.mxu0
    %v739 = vadd.f32 %v655, %v738
    %v740 = vpop.f32.mrf.mxu0
    %741 = vdwg.mxu0
    %v742 = vpack.c.bf16 %v739, %v739
    %743 = vst [vmem:[%s141] sm:$0xf] %v742
    %v744 = vld [vmem:[%s489] sm:$0xf]
    %v746 = vsel %vm241, %v744, 0
    %748 = vmatpush.bf16.msra.mxu0 0
    %749 = vmatpush.bf16.msra.mxu0 0
    %750 = vmatpush.bf16.msra.mxu0 0
    %751 = vmatpush.bf16.msra.mxu0 0
    %752 = vmatpush.bf16.msra.mxu0 0
    %753 = vmatpush.bf16.msra.mxu0 0
    %754 = vmatpush.bf16.msra.mxu0 %v666
    %755 = vmatpush.bf16.msra.mxu0 %v665
    %756 = vmatmul.bf16.gmra.mxu0 %v746
    %v757 = vpop.f32.mrf.mxu0
    %v758 = vadd.f32 %v655, %v757
    %v759 = vpop.f32.mrf.mxu0
    %760 = vdwg.mxu0
    %v761 = vpack.c.bf16 %v758, %v758
    %762 = vst [vmem:[%s162] sm:$0xf] %v761
    %v763 = vld [vmem:[%s540] sm:$0xf]
    %v765 = vsel %vm241, %v763, 0
    %767 = vmatpush.bf16.msra.mxu0 0
    %768 = vmatpush.bf16.msra.mxu0 0
    %769 = vmatpush.bf16.msra.mxu0 0
    %770 = vmatpush.bf16.msra.mxu0 0
    %771 = vmatpush.bf16.msra.mxu0 0
    %772 = vmatpush.bf16.msra.mxu0 0
    %773 = vmatpush.bf16.msra.mxu0 %v666
    %774 = vmatpush.bf16.msra.mxu0 %v665
    %775 = vmatmul.bf16.gmra.mxu0 %v765
    %v776 = vpop.f32.mrf.mxu0
    %v777 = vadd.f32 %v655, %v776
    %v778 = vpop.f32.mrf.mxu0
    %779 = vdwg.mxu0
    %v780 = vpack.c.bf16 %v777, %v777
    %781 = vst [vmem:[%s183] sm:$0xf] %v780
    %v782 = vld [vmem:[%s591] sm:$0xf]
    %v784 = vsel %vm241, %v782, 0
    %786 = vmatpush.bf16.msra.mxu0 0
    %787 = vmatpush.bf16.msra.mxu0 0
    %788 = vmatpush.bf16.msra.mxu0 0
    %789 = vmatpush.bf16.msra.mxu0 0
    %790 = vmatpush.bf16.msra.mxu0 0
    %791 = vmatpush.bf16.msra.mxu0 0
    %792 = vmatpush.bf16.msra.mxu0 %v666
    %793 = vmatpush.bf16.msra.mxu0 %v665
    %794 = vmatmul.bf16.gmra.mxu0 %v784
    %v795 = vpop.f32.mrf.mxu0
    %v796 = vadd.f32 %v655, %v795
    %v797 = vpop.f32.mrf.mxu0
    %798 = vdwg.mxu0
    %v799 = vpack.c.bf16 %v796, %v796
    %800 = vst [vmem:[%s204] sm:$0xf] %v799
    %v801 = vld [vmem:[%s642] sm:$0xf]
    %v803 = vsel %vm241, %v801, 0
    %805 = vmatpush.bf16.msra.mxu0 0
    %806 = vmatpush.bf16.msra.mxu0 0
    %807 = vmatpush.bf16.msra.mxu0 0
    %808 = vmatpush.bf16.msra.mxu0 0
    %809 = vmatpush.bf16.msra.mxu0 0
    %810 = vmatpush.bf16.msra.mxu0 0
    %811 = vmatpush.bf16.msra.mxu0 %v666
    %812 = vmatpush.bf16.msra.mxu0 %v665
    %813 = vmatmul.bf16.gmra.mxu0 %v803
    %v814 = vpop.f32.mrf.mxu0
    %v815 = vadd.f32 %v655, %v814
    %v816 = vpop.f32.mrf.mxu0
    %817 = vdwg.mxu0
    %v818 = vpack.c.bf16 %v815, %v815
    %819 = vst [vmem:[%s225] sm:$0xf] %v818
    %v820 = vld [vmem:[#allocation3] sm:$0xf]
    %v821 = vunpack.c.l.bf16 %v820
    %v826 = vunpack.c.l.b16 %v648
    %v827 = vunpack.c.l.b16 %v649
    %v828 = vunpack.c.l.b16 %v650
    %v829 = vunpack.c.l.b16 %v651
    %v830 = vpack.c.b16 %v827, %v826
    %v831 = vpack.c.b16 %v829, %v828
    %834 = vmatpush.bf16.msra.mxu0 0
    %835 = vmatpush.bf16.msra.mxu0 0
    %836 = vmatpush.bf16.msra.mxu0 0
    %837 = vmatpush.bf16.msra.mxu0 0
    %838 = vmatpush.bf16.msra.mxu0 0
    %839 = vmatpush.bf16.msra.mxu0 0
    %840 = vmatpush.bf16.msra.mxu0 %v831
    %841 = vmatpush.bf16.msra.mxu0 %v830
    %842 = vmatmul.bf16.gmra.mxu0 %v243
    %v843 = vpop.f32.mrf.mxu0
    %v844 = vadd.f32 %v821, %v843
    %v845 = vpop.f32.mrf.mxu0
    %846 = vdwg.mxu0
    %v847 = vtanh.pop %v844
    %v848 = vadd.f32 %v847, 1.0
    %v849 = vmul.f32 %v848, 0.5
    %v850 = vsel %vm46, %v847, %v849
    %v851 = vmul.f32 %v850, 0.0
    %853 = vrot.lane.b32.xlu0 %v850, 64
    %v854 = vpop.permute.xlu0 %853
    %v856 = vmul.f32 %v850, %v854
    %858 = vrot.lane.b32.xlu0 %v856, 32
    %v859 = vpop.permute.xlu0 %858
    %v861 = vadd.f32 %v851, %v859
    %v862 = vtanh.pop %v861
    %864 = vrot.lane.b32.xlu0 %v862, 64
    %v865 = vpop.permute.xlu0 %864
    %v867 = vmul.f32 %v850, %v865
    %v868 = vpack.c.bf16 %v867, %v867
    %v869 = vld [vmem:[%s99] sm:$0xf]
    %v870 = vunpack.c.l.bf16 %v869
    %872 = vrot.lane.b32.xlu0 %v868, 32
    %v873 = vpop.permute.xlu0 %872
    %v875 = vsel %vm241, %v873, 0
    %877 = vmatpush.bf16.msra.mxu0 0
    %878 = vmatpush.bf16.msra.mxu0 0
    %879 = vmatpush.bf16.msra.mxu0 0
    %880 = vmatpush.bf16.msra.mxu0 0
    %881 = vmatpush.bf16.msra.mxu0 0
    %882 = vmatpush.bf16.msra.mxu0 0
    %883 = vmatpush.bf16.msra.mxu0 %v831
    %884 = vmatpush.bf16.msra.mxu0 %v830
    %885 = vmatmul.bf16.gmra.mxu0 %v875
    %v886 = vpop.f32.mrf.mxu0
    %v887 = vadd.f32 %v870, %v886
    %v888 = vpop.f32.mrf.mxu0
    %889 = vdwg.mxu0
    %v890 = vtanh.pop %v887
    %v891 = vadd.f32 %v890, 1.0
    %v892 = vmul.f32 %v891, 0.5
    %v893 = vsel %vm46, %v890, %v892
    %v894 = vmul.f32 %v893, %v861
    %896 = vrot.lane.b32.xlu0 %v893, 64
    %v897 = vpop.permute.xlu0 %896
    %v899 = vmul.f32 %v893, %v897
    %901 = vrot.lane.b32.xlu0 %v899, 32
    %v902 = vpop.permute.xlu0 %901
    %v904 = vadd.f32 %v894, %v902
    %v905 = vtanh.pop %v904
    %907 = vrot.lane.b32.xlu0 %v905, 64
    %v908 = vpop.permute.xlu0 %907
    %v910 = vmul.f32 %v893, %v908
    %v911 = vpack.c.bf16 %v910, %v910
    %v912 = vld [vmem:[%s120] sm:$0xf]
    %v913 = vunpack.c.l.bf16 %v912
    %915 = vrot.lane.b32.xlu0 %v911, 32
    %v916 = vpop.permute.xlu0 %915
    %v918 = vsel %vm241, %v916, 0
    %920 = vmatpush.bf16.msra.mxu0 0
    %921 = vmatpush.bf16.msra.mxu0 0
    %922 = vmatpush.bf16.msra.mxu0 0
    %923 = vmatpush.bf16.msra.mxu0 0
    %924 = vmatpush.bf16.msra.mxu0 0
    %925 = vmatpush.bf16.msra.mxu0 0
    %926 = vmatpush.bf16.msra.mxu0 %v831
    %927 = vmatpush.bf16.msra.mxu0 %v830
    %928 = vmatmul.bf16.gmra.mxu0 %v918
    %v929 = vpop.f32.mrf.mxu0
    %v930 = vadd.f32 %v913, %v929
    %v931 = vpop.f32.mrf.mxu0
    %932 = vdwg.mxu0
    %v933 = vtanh.pop %v930
    %v934 = vadd.f32 %v933, 1.0
    %v935 = vmul.f32 %v934, 0.5
    %v936 = vsel %vm46, %v933, %v935
    %v937 = vmul.f32 %v936, %v904
    %939 = vrot.lane.b32.xlu0 %v936, 64
    %v940 = vpop.permute.xlu0 %939
    %v942 = vmul.f32 %v936, %v940
    %944 = vrot.lane.b32.xlu0 %v942, 32
    %v945 = vpop.permute.xlu0 %944
    %v947 = vadd.f32 %v937, %v945
    %v948 = vtanh.pop %v947
    %950 = vrot.lane.b32.xlu0 %v948, 64
    %v951 = vpop.permute.xlu0 %950
    %v953 = vmul.f32 %v936, %v951
    %v954 = vpack.c.bf16 %v953, %v953
    %v955 = vld [vmem:[%s141] sm:$0xf]
    %v956 = vunpack.c.l.bf16 %v955
    %958 = vrot.lane.b32.xlu0 %v954, 32
    %v959 = vpop.permute.xlu0 %958
    %v961 = vsel %vm241, %v959, 0
    %963 = vmatpush.bf16.msra.mxu0 0
    %964 = vmatpush.bf16.msra.mxu0 0
    %965 = vmatpush.bf16.msra.mxu0 0
    %966 = vmatpush.bf16.msra.mxu0 0
    %967 = vmatpush.bf16.msra.mxu0 0
    %968 = vmatpush.bf16.msra.mxu0 0
    %969 = vmatpush.bf16.msra.mxu0 %v831
    %970 = vmatpush.bf16.msra.mxu0 %v830
    %971 = vmatmul.bf16.gmra.mxu0 %v961
    %v972 = vpop.f32.mrf.mxu0
    %v973 = vadd.f32 %v956, %v972
    %v974 = vpop.f32.mrf.mxu0
    %975 = vdwg.mxu0
    %v976 = vtanh.pop %v973
    %v977 = vadd.f32 %v976, 1.0
    %v978 = vmul.f32 %v977, 0.5
    %v979 = vsel %vm46, %v976, %v978
    %v980 = vmul.f32 %v979, %v947
    %982 = vrot.lane.b32.xlu0 %v979, 64
    %v983 = vpop.permute.xlu0 %982
    %v985 = vmul.f32 %v979, %v983
    %987 = vrot.lane.b32.xlu0 %v985, 32
    %v988 = vpop.permute.xlu0 %987
    %v990 = vadd.f32 %v980, %v988
    %v991 = vtanh.pop %v990
    %993 = vrot.lane.b32.xlu0 %v991, 64
    %v994 = vpop.permute.xlu0 %993
    %v996 = vmul.f32 %v979, %v994
    %v997 = vpack.c.bf16 %v996, %v996
    %v998 = vld [vmem:[%s162] sm:$0xf]
    %v999 = vunpack.c.l.bf16 %v998
    %1001 = vrot.lane.b32.xlu0 %v997, 32
    %v1002 = vpop.permute.xlu0 %1001
    %v1004 = vsel %vm241, %v1002, 0
    %1006 = vmatpush.bf16.msra.mxu0 0
    %1007 = vmatpush.bf16.msra.mxu0 0
    %1008 = vmatpush.bf16.msra.mxu0 0
    %1009 = vmatpush.bf16.msra.mxu0 0
    %1010 = vmatpush.bf16.msra.mxu0 0
    %1011 = vmatpush.bf16.msra.mxu0 0
    %1012 = vmatpush.bf16.msra.mxu0 %v831
    %1013 = vmatpush.bf16.msra.mxu0 %v830
    %1014 = vmatmul.bf16.gmra.mxu0 %v1004
    %v1015 = vpop.f32.mrf.mxu0
    %v1016 = vadd.f32 %v999, %v1015
    %v1017 = vpop.f32.mrf.mxu0
    %1018 = vdwg.mxu0
    %v1019 = vtanh.pop %v1016
    %v1020 = vadd.f32 %v1019, 1.0
    %v1021 = vmul.f32 %v1020, 0.5
    %v1022 = vsel %vm46, %v1019, %v1021
    %v1023 = vmul.f32 %v1022, %v990
    %1025 = vrot.lane.b32.xlu0 %v1022, 64
    %v1026 = vpop.permute.xlu0 %1025
    %v1028 = vmul.f32 %v1022, %v1026
    %1030 = vrot.lane.b32.xlu0 %v1028, 32
    %v1031 = vpop.permute.xlu0 %1030
    %v1033 = vadd.f32 %v1023, %v1031
    %v1034 = vtanh.pop %v1033
    %1036 = vrot.lane.b32.xlu0 %v1034, 64
    %v1037 = vpop.permute.xlu0 %1036
    %v1039 = vmul.f32 %v1022, %v1037
    %v1040 = vpack.c.bf16 %v1039, %v1039
    %v1041 = vld [vmem:[%s183] sm:$0xf]
    %v1042 = vunpack.c.l.bf16 %v1041
    %1044 = vrot.lane.b32.xlu0 %v1040, 32
    %v1045 = vpop.permute.xlu0 %1044
    %v1047 = vsel %vm241, %v1045, 0
    %1049 = vmatpush.bf16.msra.mxu0 0
    %1050 = vmatpush.bf16.msra.mxu0 0
    %1051 = vmatpush.bf16.msra.mxu0 0
    %1052 = vmatpush.bf16.msra.mxu0 0
    %1053 = vmatpush.bf16.msra.mxu0 0
    %1054 = vmatpush.bf16.msra.mxu0 0
    %1055 = vmatpush.bf16.msra.mxu0 %v831
    %1056 = vmatpush.bf16.msra.mxu0 %v830
    %1057 = vmatmul.bf16.gmra.mxu0 %v1047
    %v1058 = vpop.f32.mrf.mxu0
    %v1059 = vadd.f32 %v1042, %v1058
    %v1060 = vpop.f32.mrf.mxu0
    %1061 = vdwg.mxu0
    %v1062 = vtanh.pop %v1059
    %v1063 = vadd.f32 %v1062, 1.0
    %v1064 = vmul.f32 %v1063, 0.5
    %v1065 = vsel %vm46, %v1062, %v1064
    %v1066 = vmul.f32 %v1065, %v1033
    %1068 = vrot.lane.b32.xlu0 %v1065, 64
    %v1069 = vpop.permute.xlu0 %1068
    %v1071 = vmul.f32 %v1065, %v1069
    %1073 = vrot.lane.b32.xlu0 %v1071, 32
    %v1074 = vpop.permute.xlu0 %1073
    %v1076 = vadd.f32 %v1066, %v1074
    %v1077 = vtanh.pop %v1076
    %1079 = vrot.lane.b32.xlu0 %v1077, 64
    %v1080 = vpop.permute.xlu0 %1079
    %v1082 = vmul.f32 %v1065, %v1080
    %v1083 = vpack.c.bf16 %v1082, %v1082
    %v1084 = vld [vmem:[%s204] sm:$0xf]
    %v1085 = vunpack.c.l.bf16 %v1084
    %1087 = vrot.lane.b32.xlu0 %v1083, 32
    %v1088 = vpop.permute.xlu0 %1087
    %v1090 = vsel %vm241, %v1088, 0
    %1092 = vmatpush.bf16.msra.mxu0 0
    %1093 = vmatpush.bf16.msra.mxu0 0
    %1094 = vmatpush.bf16.msra.mxu0 0
    %1095 = vmatpush.bf16.msra.mxu0 0
    %1096 = vmatpush.bf16.msra.mxu0 0
    %1097 = vmatpush.bf16.msra.mxu0 0
    %1098 = vmatpush.bf16.msra.mxu0 %v831
    %1099 = vmatpush.bf16.msra.mxu0 %v830
    %1100 = vmatmul.bf16.gmra.mxu0 %v1090
    %v1101 = vpop.f32.mrf.mxu0
    %v1102 = vadd.f32 %v1085, %v1101
    %v1103 = vpop.f32.mrf.mxu0
    %1104 = vdwg.mxu0
    %v1105 = vtanh.pop %v1102
    %v1106 = vadd.f32 %v1105, 1.0
    %v1107 = vmul.f32 %v1106, 0.5
    %v1108 = vsel %vm46, %v1105, %v1107
    %v1109 = vmul.f32 %v1108, %v1076
    %1111 = vrot.lane.b32.xlu0 %v1108, 64
    %v1112 = vpop.permute.xlu0 %1111
    %v1114 = vmul.f32 %v1108, %v1112
    %1116 = vrot.lane.b32.xlu0 %v1114, 32
    %v1117 = vpop.permute.xlu0 %1116
    %v1119 = vadd.f32 %v1109, %v1117
    %v1120 = vtanh.pop %v1119
    %1122 = vrot.lane.b32.xlu0 %v1120, 64
    %v1123 = vpop.permute.xlu0 %1122
    %v1125 = vmul.f32 %v1108, %v1123
    %v1126 = vpack.c.bf16 %v1125, %v1125
    %v1127 = vld [vmem:[%s225] sm:$0xf]
    %v1128 = vunpack.c.l.bf16 %v1127
    %1130 = vrot.lane.b32.xlu0 %v1126, 32
    %v1131 = vpop.permute.xlu0 %1130
    %v1133 = vsel %vm241, %v1131, 0
    %1135 = vmatpush.bf16.msra.mxu0 0
    %1136 = vmatpush.bf16.msra.mxu0 0
    %1137 = vmatpush.bf16.msra.mxu0 0
    %1138 = vmatpush.bf16.msra.mxu0 0
    %1139 = vmatpush.bf16.msra.mxu0 0
    %1140 = vmatpush.bf16.msra.mxu0 0
    %1141 = vmatpush.bf16.msra.mxu0 %v831
    %1142 = vmatpush.bf16.msra.mxu0 %v830
    %1143 = vmatmul.bf16.gmra.mxu0 %v1133
    %v1144 = vpop.f32.mrf.mxu0
    %v1145 = vadd.f32 %v1128, %v1144
    %v1146 = vpop.f32.mrf.mxu0
    %1147 = vdwg.mxu0
    %v1148 = vtanh.pop %v1145
    %v1149 = vadd.f32 %v1148, 1.0
    %v1150 = vmul.f32 %v1149, 0.5
    %v1151 = vsel %vm46, %v1148, %v1150
    %v1152 = vmul.f32 %v1151, %v1119
    %1154 = vrot.lane.b32.xlu0 %v1151, 64
    %v1155 = vpop.permute.xlu0 %1154
    %v1157 = vmul.f32 %v1151, %v1155
    %1159 = vrot.lane.b32.xlu0 %v1157, 32
    %v1160 = vpop.permute.xlu0 %1159
    %v1162 = vadd.f32 %v1152, %v1160
    %v1163 = vtanh.pop %v1162
    %1165 = vrot.lane.b32.xlu0 %v1163, 64
    %v1166 = vpop.permute.xlu0 %1165
    %v1168 = vmul.f32 %v1151, %v1166
    %v1169 = vtanh.pop %v1168
    %1171 = vrot.lane.b32.xlu0 %v1169, 32
    %v1172 = vpop.permute.xlu0 %1171
    %1174 = vst.msk [vmem:[#allocation7] sm:$0xff] %vm241, %v1172
    // Predicated region
    $region34: #{tpu_custom_call.1} parent=1 // pred_check
      _
    $region35: #{tpu_custom_call.1} parent=1 // pred_check_branch
      %1176 = sbr.rel (0) target = $region37
    $region36: #{tpu_custom_call.1} parent=1 // pred_region
      %1178 = vsyncadd [#allocation6], 0
      %s1180 = sshll.u32 [#allocation7], 4
      %s1181 = int_to_ptr.vmem [resolvable:$true] %s1180
      %s1182 = sshll.u32 %s7, 4
      %s1183 = int_to_ptr.hbm [resolvable:$true] %s1182
      %1185 = dma.vmem_to_hbm [thread:$0]  %s1181, 128, %s1183, [#allocation6]
    $region37: #{tpu_custom_call.1} parent=1 // pred_fallthru
      _
    // Predicated region
    $region38: #{tpu_custom_call.1} parent=1 // pred_check
      _
    $region39: #{tpu_custom_call.1} parent=1 // pred_check_branch
      %1187 = sbr.rel (0) target = $region41
    $region40: #{tpu_custom_call.1} parent=1 // pred_region
      %1189 = dma.done [#allocation6], 128
    $region41: #{tpu_custom_call.1} parent=1 // pred_fallthru
      _
    %1190 = vsyncpa [#allocation5], 1
    %1191 = vsyncpa [#allocation6], 1

</llo_original>
